<compile_context>
chip_gen: v7x
topology: tpu7x:2x2x1
jax: 0.10.0
libtpu: 0.0.40
codegen_flags: <defaults>
</compile_context>

<pallas_src>
import functools

import jax
import jax.numpy as jnp
import numpy as np
from jax.experimental import pallas as pl
from jax.experimental.pallas import tpu as pltpu


def _sis_kernel(data_ref, noise_ref, Ak_ref, Hk_ref, mu0_ref, sum_ref, out_ref,
                *, neg_half_inv_sigma2, T, B, D):
    DB = D * B

    # Loop-invariant operands, loaded/derived once.
    A_k = Ak_ref[...]                                   # (DB, DB)  kron(A, I_B)
    H_k = Hk_ref[...]                                   # (OB, DB)  kron(H, I_B)
    mu0 = mu0_ref[...]                                  # (DB, 1)
    # Fold the Gaussian scale into the OBS-summing matrix (once, off the loop).
    sum_mat = sum_ref[...] * neg_half_inv_sigma2        # (B, OB)

    def loglik_inc(state, t):
        # log N(y_t | H x_t, sigma^2 I) up to an additive constant, per particle.
        pred = jnp.dot(H_k, state, preferred_element_type=jnp.float32)   # (OB, P)
        diff = pred - data_ref[t]                                        # y bcast on lanes
        sq = diff * diff
        # per-batch sum over OBS rows (rows ordered o*B + b) as one tiny MXU dot,
        # already scaled by -0.5/sigma^2.
        return jnp.dot(sum_mat, sq, preferred_element_type=jnp.float32)  # (B, P)

    def emit(state, w, t):
        # Output path only: softmax + filtering mean.  Nothing here feeds the
        # t->t+1 carry, so it overlaps the next step's transition matmul.
        m = jnp.max(w, axis=1, keepdims=True)            # (B, 1)
        e = jnp.exp(w - m)                               # (B, P)  single exp pass
        s = jnp.sum(e, axis=1, keepdims=True)            # (B, 1)
        # One K=128 MXU matmul; includes cross-batch terms (diag taken on host).
        raw = jax.lax.dot_general(e, state, (((1,), (1,)), ((), ())),
                                  preferred_element_type=jnp.float32)    # (B, DB)
        scaled = raw * pl.reciprocal(s, approx=False)    # normalize AFTER reduction
        out_ref[:, t * DB:(t + 1) * DB] = scaled         # static lane slice

    # ---- time 0: initial proposal (prior sample, uniform prior log-weights) ----
    state = noise_ref[0] + mu0                           # (DB, P)
    w = loglik_inc(state, 0)                             # unnormalized carry (B, P)
    emit(state, w, 0)

    # ---- times 1..T-1: transition + reweight, fully unrolled, one grid step ----
    # NOTE: for long T, re-center `w` with the previous step's max here.
    for t in range(1, T):
        state = (jnp.dot(A_k, state, preferred_element_type=jnp.float32)
                 + noise_ref[t])
        w = w + loglik_inc(state, t)
        emit(state, w, t)


def sis_forward(data, noise, A, H, mu0, sigma2):
    """data: (T, B, OBS) f32; noise: (T, B, P, D) f32; A: (D, D); H: (OBS, D);
    mu0: (D,).  Returns (T, B, D) f32 — stacked aggregation outputs, T = time_extent+1."""
    T, B, OBS = data.shape
    _, _, P, D = noise.shape
    DB, OB = D * B, OBS * B

    # Lane-dense, batch-fused layout (layout plumbing only — done once outside):
    # state rows interleaved as d*B + b; observation rows as o*B + b.
    eyeB = jnp.eye(B, dtype=jnp.float32)
    A_kron = jnp.kron(A.astype(jnp.float32), eyeB)                    # (DB, DB)
    H_kron = jnp.kron(H.astype(jnp.float32), eyeB)                    # (OB, DB)
    sum_mat = jnp.kron(jnp.ones((1, OBS), jnp.float32), eyeB)         # (B, OB)
    mu0_st = jnp.repeat(mu0.astype(jnp.float32), B).reshape(DB, 1)    # (DB, 1)
    noise_st = noise.transpose(0, 3, 1, 2).reshape(T, DB, P)          # (T, DB, P)
    data_st = data.transpose(0, 2, 1).reshape(T, OB, 1)               # (T, OB, 1)

    kernel = functools.partial(_sis_kernel,
                               neg_half_inv_sigma2=-0.5 / float(sigma2),
                               T=T, B=B, D=D)

    grid_spec = pltpu.PrefetchScalarGridSpec(
        num_scalar_prefetch=0,
        grid=(1,),                                       # whole problem resident in VMEM
        in_specs=[
            pl.BlockSpec((T, OB, 1), lambda i: (0, 0, 0)),   # observations
            pl.BlockSpec((T, DB, P), lambda i: (0, 0, 0)),   # process noise (~64 KiB)
            pl.BlockSpec((DB, DB), lambda i: (0, 0)),        # kron(A, I_B)
            pl.BlockSpec((OB, DB), lambda i: (0, 0)),        # kron(H, I_B)
            pl.BlockSpec((DB, 1), lambda i: (0, 0)),         # stacked mu0
            pl.BlockSpec((B, OB), lambda i: (0, 0)),         # OBS summing matrix
        ],
        out_specs=pl.BlockSpec((B, T * DB), lambda i: (0, 0)),
    )

    out = pl.pallas_call(
        kernel,
        out_shape=jax.ShapeDtypeStruct((B, T * DB), jnp.float32),
        grid_spec=grid_spec,
        compiler_params=pltpu.CompilerParams(
            dimension_semantics=("arbitrary",)),
    )(data_st, noise_st, A_kron, H_kron, mu0_st, sum_mat)

    # out[b, t*DB + d*B + b'] holds weights-of-batch-b applied to particles-of-
    # batch-b'; the filtering mean is the b == b' diagonal.
    out4 = out.reshape(B, T, D, B)
    return jnp.diagonal(out4, axis1=0, axis2=3).transpose(0, 2, 1)    # (T, B, D)


def sis_reference(data, noise, A, H, mu0, sigma2):
    """Pure-JAX reference matching the PyTorch SIS.forward semantics."""
    T, B, OBS = data.shape
    _, _, P, D = noise.shape
    outs = []
    state = mu0[None, None, :] + noise[0]
    logw = jnp.zeros((B, P), jnp.float32)
    for t in range(T):
        if t > 0:
            state = jnp.einsum('bpd,ed->bpe', state, A) + noise[t]
        pred = jnp.einsum('bpd,od->bpo', state, H)
        diff = pred - data[t][:, None, :]
        loglik = -0.5 / sigma2 * jnp.sum(diff * diff, axis=-1)
        w = logw + loglik
        lse = jax.scipy.special.logsumexp(w, axis=-1, keepdims=True)
        logw = w - lse
        outs.append(jnp.sum(jnp.exp(logw)[..., None] * state, axis=1))
    return jnp.stack(outs, axis=0).astype(jnp.float32)


if __name__ == "__main__":
    # time_extent = 7  ->  T = time_extent + 1 = 8 importance-sample populations
    T, B, P, D, OBS = 8, 2, 128, 8, 4
    sigma2 = 0.5

    key = jax.random.PRNGKey(0)
    k1, k2, k3, k4, k5 = jax.random.split(key, 5)
    data = jax.random.normal(k1, (T, B, OBS), jnp.float32)
    noise = 0.1 * jax.random.normal(k2, (T, B, P, D), jnp.float32)
    A = 0.8 * jnp.eye(D, dtype=jnp.float32) \
        + 0.05 * jax.random.normal(k3, (D, D), jnp.float32)
    H = jax.random.normal(k4, (OBS, D), jnp.float32) / jnp.sqrt(float(D))
    mu0 = jax.random.normal(k5, (D,), jnp.float32)

    out = sis_forward(data, noise, A, H, mu0, sigma2)
    jax.block_until_ready(out)

    ref = sis_reference(data, noise, A, H, mu0, sigma2)
    np.testing.assert_allclose(np.asarray(out), np.asarray(ref),
                               rtol=1e-4, atol=1e-4)
    print("KERNEL_OK")
</pallas_src>

<mosaic_0001>
module attributes {stable_mosaic.version = 11 : i64} {
  func.func @_sis_kernel(%arg0: i32, %arg1: memref<8x8x1xf32, #tpu.memory_space<vmem>>, %arg2: memref<8x16x128xf32, #tpu.memory_space<vmem>>, %arg3: memref<16x16xf32, #tpu.memory_space<vmem>>, %arg4: memref<8x16xf32, #tpu.memory_space<vmem>>, %arg5: memref<16x1xf32, #tpu.memory_space<vmem>>, %arg6: memref<2x8xf32, #tpu.memory_space<vmem>>, %arg7: memref<2x128xf32, #tpu.memory_space<vmem>>) attributes {dimension_semantics = [#tpu.dimension_semantics<arbitrary>], iteration_bounds = array<i64: 1>, scalar_prefetch = 0 : i64, scratch_operands = 0 : i64, tpu.core_type = #tpu.core_type<tc>, window_params = [{pipeline_mode = #tpu.pipeline_mode<synchronous>, transform_indices = @transform_0, window_bounds = array<i64: 8, 8, 1>}, {pipeline_mode = #tpu.pipeline_mode<synchronous>, transform_indices = @transform_1, window_bounds = array<i64: 8, 16, 128>}, {pipeline_mode = #tpu.pipeline_mode<synchronous>, transform_indices = @transform_2, window_bounds = array<i64: 16, 16>}, {pipeline_mode = #tpu.pipeline_mode<synchronous>, transform_indices = @transform_3, window_bounds = array<i64: 8, 16>}, {pipeline_mode = #tpu.pipeline_mode<synchronous>, transform_indices = @transform_4, window_bounds = array<i64: 16, 1>}, {pipeline_mode = #tpu.pipeline_mode<synchronous>, transform_indices = @transform_5, window_bounds = array<i64: 2, 8>}, {pipeline_mode = #tpu.pipeline_mode<synchronous>, transform_indices = @transform_6, window_bounds = array<i64: 2, 128>}]} {
    %c0 = arith.constant 0 : index
    %c0_0 = arith.constant 0 : index
    %0 = vector.load %arg3[%c0, %c0_0] : memref<16x16xf32, #tpu.memory_space<vmem>>, vector<16x16xf32>
    %c0_1 = arith.constant 0 : index
    %c0_2 = arith.constant 0 : index
    %1 = vector.load %arg4[%c0_1, %c0_2] : memref<8x16xf32, #tpu.memory_space<vmem>>, vector<8x16xf32>
    %c0_3 = arith.constant 0 : index
    %c0_4 = arith.constant 0 : index
    %2 = vector.load %arg5[%c0_3, %c0_4] : memref<16x1xf32, #tpu.memory_space<vmem>>, vector<16x1xf32>
    %c0_5 = arith.constant 0 : index
    %c0_6 = arith.constant 0 : index
    %3 = vector.load %arg6[%c0_5, %c0_6] : memref<2x8xf32, #tpu.memory_space<vmem>>, vector<2x8xf32>
    %cst = arith.constant -1.000000e+00 : f32
    %4 = vector.broadcast %cst : f32 to vector<2x8xf32>
    %5 = arith.mulf %3, %4 : vector<2x8xf32>
    %c0_7 = arith.constant 0 : index
    %c0_8 = arith.constant 0 : index
    %c0_9 = arith.constant 0 : index
    %6 = vector.load %arg2[%c0_7, %c0_8, %c0_9] : memref<8x16x128xf32, #tpu.memory_space<vmem>>, vector<1x16x128xf32>
    %7 = vector.shape_cast %6 : vector<1x16x128xf32> to vector<16x128xf32>
    %8 = vector.broadcast %2 : vector<16x1xf32> to vector<16x128xf32>
    %9 = arith.addf %7, %8 : vector<16x128xf32>
    %cst_10 = arith.constant dense<0.000000e+00> : vector<8x128xf32>
    %10 = tpu.matmul %1, %9, %cst_10 {dimension_numbers = #tpu.dot_dimension_numbers<[1], [0], [0], [1], [0, 0, 1, 1], [], []>} : vector<8x16xf32>, vector<16x128xf32>, vector<8x128xf32> -> vector<8x128xf32>
    %c0_11 = arith.constant 0 : index
    %c0_12 = arith.constant 0 : index
    %c0_13 = arith.constant 0 : index
    %11 = vector.load %arg1[%c0_11, %c0_12, %c0_13] : memref<8x8x1xf32, #tpu.memory_space<vmem>>, vector<1x8x1xf32>
    %12 = vector.shape_cast %11 : vector<1x8x1xf32> to vector<8x1xf32>
    %13 = vector.broadcast %12 : vector<8x1xf32> to vector<8x128xf32>
    %14 = arith.subf %10, %13 : vector<8x128xf32>
    %15 = arith.mulf %14, %14 : vector<8x128xf32>
    %cst_14 = arith.constant dense<0.000000e+00> : vector<2x128xf32>
    %16 = tpu.matmul %5, %15, %cst_14 {dimension_numbers = #tpu.dot_dimension_numbers<[1], [0], [0], [1], [0, 0, 1, 1], [], []>} : vector<2x8xf32>, vector<8x128xf32>, vector<2x128xf32> -> vector<2x128xf32>
    %cst_15 = arith.constant dense<0xFF800000> : vector<2xf32>
    %17 = vector.multi_reduction <maximumf>, %16, %cst_15 [1] : vector<2x128xf32> to vector<2xf32>
    %18 = vector.shape_cast %17 : vector<2xf32> to vector<2x1xf32>
    %19 = vector.broadcast %18 : vector<2x1xf32> to vector<2x128xf32>
    %20 = arith.subf %16, %19 : vector<2x128xf32>
    %21 = math.exp %20 : vector<2x128xf32>
    %cst_16 = arith.constant dense<0.000000e+00> : vector<2xf32>
    %22 = vector.multi_reduction <add>, %21, %cst_16 [1] : vector<2x128xf32> to vector<2xf32>
    %23 = vector.shape_cast %22 : vector<2xf32> to vector<2x1xf32>
    %cst_17 = arith.constant dense<0.000000e+00> : vector<2x16xf32>
    %24 = tpu.matmul %21, %9, %cst_17 {dimension_numbers = #tpu.dot_dimension_numbers<[1], [1], [0], [0], [0, 0, 1, 0], [], []>} : vector<2x128xf32>, vector<16x128xf32>, vector<2x16xf32> -> vector<2x16xf32>
    %25 = tpu.reciprocal %23 : vector<2x1xf32> -> vector<2x1xf32>
    %26 = vector.broadcast %25 : vector<2x1xf32> to vector<2x16xf32>
    %27 = arith.mulf %24, %26 : vector<2x16xf32>
    %c0_18 = arith.constant 0 : index
    %c0_19 = arith.constant 0 : index
    %28 = vector.load %arg7[%c0_18, %c0_19] : memref<2x128xf32, #tpu.memory_space<vmem>>, vector<2x16xf32>
    tpu.vector_store %arg7[%c0_18, %c0_19], %27 {strides = array<i32>} : memref<2x128xf32, #tpu.memory_space<vmem>>, vector<2x16xf32>,
    %cst_20 = arith.constant dense<0.000000e+00> : vector<16x128xf32>
    %29 = tpu.matmul %0, %9, %cst_20 {dimension_numbers = #tpu.dot_dimension_numbers<[1], [0], [0], [1], [0, 0, 1, 1], [], []>} : vector<16x16xf32>, vector<16x128xf32>, vector<16x128xf32> -> vector<16x128xf32>
    %c1 = arith.constant 1 : index
    %c0_21 = arith.constant 0 : index
    %c0_22 = arith.constant 0 : index
    %30 = vector.load %arg2[%c1, %c0_21, %c0_22] : memref<8x16x128xf32, #tpu.memory_space<vmem>>, vector<1x16x128xf32>
    %31 = vector.shape_cast %30 : vector<1x16x128xf32> to vector<16x128xf32>
    %32 = arith.addf %29, %31 : vector<16x128xf32>
    %cst_23 = arith.constant dense<0.000000e+00> : vector<8x128xf32>
    %33 = tpu.matmul %1, %32, %cst_23 {dimension_numbers = #tpu.dot_dimension_numbers<[1], [0], [0], [1], [0, 0, 1, 1], [], []>} : vector<8x16xf32>, vector<16x128xf32>, vector<8x128xf32> -> vector<8x128xf32>
    %c1_24 = arith.constant 1 : index
    %c0_25 = arith.constant 0 : index
    %c0_26 = arith.constant 0 : index
    %34 = vector.load %arg1[%c1_24, %c0_25, %c0_26] : memref<8x8x1xf32, #tpu.memory_space<vmem>>, vector<1x8x1xf32>
    %35 = vector.shape_cast %34 : vector<1x8x1xf32> to vector<8x1xf32>
    %36 = vector.broadcast %35 : vector<8x1xf32> to vector<8x128xf32>
    %37 = arith.subf %33, %36 : vector<8x128xf32>
    %38 = arith.mulf %37, %37 : vector<8x128xf32>
    %cst_27 = arith.constant dense<0.000000e+00> : vector<2x128xf32>
    %39 = tpu.matmul %5, %38, %cst_27 {dimension_numbers = #tpu.dot_dimension_numbers<[1], [0], [0], [1], [0, 0, 1, 1], [], []>} : vector<2x8xf32>, vector<8x128xf32>, vector<2x128xf32> -> vector<2x128xf32>
    %40 = arith.addf %16, %39 : vector<2x128xf32>
    %cst_28 = arith.constant dense<0xFF800000> : vector<2xf32>
    %41 = vector.multi_reduction <maximumf>, %40, %cst_28 [1] : vector<2x128xf32> to vector<2xf32>
    %42 = vector.shape_cast %41 : vector<2xf32> to vector<2x1xf32>
    %43 = vector.broadcast %42 : vector<2x1xf32> to vector<2x128xf32>
    %44 = arith.subf %40, %43 : vector<2x128xf32>
    %45 = math.exp %44 : vector<2x128xf32>
    %cst_29 = arith.constant dense<0.000000e+00> : vector<2xf32>
    %46 = vector.multi_reduction <add>, %45, %cst_29 [1] : vector<2x128xf32> to vector<2xf32>
    %47 = vector.shape_cast %46 : vector<2xf32> to vector<2x1xf32>
    %cst_30 = arith.constant dense<0.000000e+00> : vector<2x16xf32>
    %48 = tpu.matmul %45, %32, %cst_30 {dimension_numbers = #tpu.dot_dimension_numbers<[1], [1], [0], [0], [0, 0, 1, 0], [], []>} : vector<2x128xf32>, vector<16x128xf32>, vector<2x16xf32> -> vector<2x16xf32>
    %49 = tpu.reciprocal %47 : vector<2x1xf32> -> vector<2x1xf32>
    %50 = vector.broadcast %49 : vector<2x1xf32> to vector<2x16xf32>
    %51 = arith.mulf %48, %50 : vector<2x16xf32>
    %c0_31 = arith.constant 0 : index
    %c16 = arith.constant 16 : index
    %52 = vector.load %arg7[%c0_31, %c16] : memref<2x128xf32, #tpu.memory_space<vmem>>, vector<2x16xf32>
    tpu.vector_store %arg7[%c0_31, %c16], %51 {strides = array<i32>} : memref<2x128xf32, #tpu.memory_space<vmem>>, vector<2x16xf32>,
    %cst_32 = arith.constant dense<0.000000e+00> : vector<16x128xf32>
    %53 = tpu.matmul %0, %32, %cst_32 {dimension_numbers = #tpu.dot_dimension_numbers<[1], [0], [0], [1], [0, 0, 1, 1], [], []>} : vector<16x16xf32>, vector<16x128xf32>, vector<16x128xf32> -> vector<16x128xf32>
    %c2 = arith.constant 2 : index
    %c0_33 = arith.constant 0 : index
    %c0_34 = arith.constant 0 : index
    %54 = vector.load %arg2[%c2, %c0_33, %c0_34] : memref<8x16x128xf32, #tpu.memory_space<vmem>>, vector<1x16x128xf32>
    %55 = vector.shape_cast %54 : vector<1x16x128xf32> to vector<16x128xf32>
    %56 = arith.addf %53, %55 : vector<16x128xf32>
    %cst_35 = arith.constant dense<0.000000e+00> : vector<8x128xf32>
    %57 = tpu.matmul %1, %56, %cst_35 {dimension_numbers = #tpu.dot_dimension_numbers<[1], [0], [0], [1], [0, 0, 1, 1], [], []>} : vector<8x16xf32>, vector<16x128xf32>, vector<8x128xf32> -> vector<8x128xf32>
    %c2_36 = arith.constant 2 : index
    %c0_37 = arith.constant 0 : index
    %c0_38 = arith.constant 0 : index
    %58 = vector.load %arg1[%c2_36, %c0_37, %c0_38] : memref<8x8x1xf32, #tpu.memory_space<vmem>>, vector<1x8x1xf32>
    %59 = vector.shape_cast %58 : vector<1x8x1xf32> to vector<8x1xf32>
    %60 = vector.broadcast %59 : vector<8x1xf32> to vector<8x128xf32>
    %61 = arith.subf %57, %60 : vector<8x128xf32>
    %62 = arith.mulf %61, %61 : vector<8x128xf32>
    %cst_39 = arith.constant dense<0.000000e+00> : vector<2x128xf32>
    %63 = tpu.matmul %5, %62, %cst_39 {dimension_numbers = #tpu.dot_dimension_numbers<[1], [0], [0], [1], [0, 0, 1, 1], [], []>} : vector<2x8xf32>, vector<8x128xf32>, vector<2x128xf32> -> vector<2x128xf32>
    %64 = arith.addf %40, %63 : vector<2x128xf32>
    %cst_40 = arith.constant dense<0xFF800000> : vector<2xf32>
    %65 = vector.multi_reduction <maximumf>, %64, %cst_40 [1] : vector<2x128xf32> to vector<2xf32>
    %66 = vector.shape_cast %65 : vector<2xf32> to vector<2x1xf32>
    %67 = vector.broadcast %66 : vector<2x1xf32> to vector<2x128xf32>
    %68 = arith.subf %64, %67 : vector<2x128xf32>
    %69 = math.exp %68 : vector<2x128xf32>
    %cst_41 = arith.constant dense<0.000000e+00> : vector<2xf32>
    %70 = vector.multi_reduction <add>, %69, %cst_41 [1] : vector<2x128xf32> to vector<2xf32>
    %71 = vector.shape_cast %70 : vector<2xf32> to vector<2x1xf32>
    %cst_42 = arith.constant dense<0.000000e+00> : vector<2x16xf32>
    %72 = tpu.matmul %69, %56, %cst_42 {dimension_numbers = #tpu.dot_dimension_numbers<[1], [1], [0], [0], [0, 0, 1, 0], [], []>} : vector<2x128xf32>, vector<16x128xf32>, vector<2x16xf32> -> vector<2x16xf32>
    %73 = tpu.reciprocal %71 : vector<2x1xf32> -> vector<2x1xf32>
    %74 = vector.broadcast %73 : vector<2x1xf32> to vector<2x16xf32>
    %75 = arith.mulf %72, %74 : vector<2x16xf32>
    %c0_43 = arith.constant 0 : index
    %c32 = arith.constant 32 : index
    %76 = vector.load %arg7[%c0_43, %c32] : memref<2x128xf32, #tpu.memory_space<vmem>>, vector<2x16xf32>
    tpu.vector_store %arg7[%c0_43, %c32], %75 {strides = array<i32>} : memref<2x128xf32, #tpu.memory_space<vmem>>, vector<2x16xf32>,
    %cst_44 = arith.constant dense<0.000000e+00> : vector<16x128xf32>
    %77 = tpu.matmul %0, %56, %cst_44 {dimension_numbers = #tpu.dot_dimension_numbers<[1], [0], [0], [1], [0, 0, 1, 1], [], []>} : vector<16x16xf32>, vector<16x128xf32>, vector<16x128xf32> -> vector<16x128xf32>
    %c3 = arith.constant 3 : index
    %c0_45 = arith.constant 0 : index
    %c0_46 = arith.constant 0 : index
    %78 = vector.load %arg2[%c3, %c0_45, %c0_46] : memref<8x16x128xf32, #tpu.memory_space<vmem>>, vector<1x16x128xf32>
    %79 = vector.shape_cast %78 : vector<1x16x128xf32> to vector<16x128xf32>
    %80 = arith.addf %77, %79 : vector<16x128xf32>
    %cst_47 = arith.constant dense<0.000000e+00> : vector<8x128xf32>
    %81 = tpu.matmul %1, %80, %cst_47 {dimension_numbers = #tpu.dot_dimension_numbers<[1], [0], [0], [1], [0, 0, 1, 1], [], []>} : vector<8x16xf32>, vector<16x128xf32>, vector<8x128xf32> -> vector<8x128xf32>
    %c3_48 = arith.constant 3 : index
    %c0_49 = arith.constant 0 : index
    %c0_50 = arith.constant 0 : index
    %82 = vector.load %arg1[%c3_48, %c0_49, %c0_50] : memref<8x8x1xf32, #tpu.memory_space<vmem>>, vector<1x8x1xf32>
    %83 = vector.shape_cast %82 : vector<1x8x1xf32> to vector<8x1xf32>
    %84 = vector.broadcast %83 : vector<8x1xf32> to vector<8x128xf32>
    %85 = arith.subf %81, %84 : vector<8x128xf32>
    %86 = arith.mulf %85, %85 : vector<8x128xf32>
    %cst_51 = arith.constant dense<0.000000e+00> : vector<2x128xf32>
    %87 = tpu.matmul %5, %86, %cst_51 {dimension_numbers = #tpu.dot_dimension_numbers<[1], [0], [0], [1], [0, 0, 1, 1], [], []>} : vector<2x8xf32>, vector<8x128xf32>, vector<2x128xf32> -> vector<2x128xf32>
    %88 = arith.addf %64, %87 : vector<2x128xf32>
    %cst_52 = arith.constant dense<0xFF800000> : vector<2xf32>
    %89 = vector.multi_reduction <maximumf>, %88, %cst_52 [1] : vector<2x128xf32> to vector<2xf32>
    %90 = vector.shape_cast %89 : vector<2xf32> to vector<2x1xf32>
    %91 = vector.broadcast %90 : vector<2x1xf32> to vector<2x128xf32>
    %92 = arith.subf %88, %91 : vector<2x128xf32>
    %93 = math.exp %92 : vector<2x128xf32>
    %cst_53 = arith.constant dense<0.000000e+00> : vector<2xf32>
    %94 = vector.multi_reduction <add>, %93, %cst_53 [1] : vector<2x128xf32> to vector<2xf32>
    %95 = vector.shape_cast %94 : vector<2xf32> to vector<2x1xf32>
    %cst_54 = arith.constant dense<0.000000e+00> : vector<2x16xf32>
    %96 = tpu.matmul %93, %80, %cst_54 {dimension_numbers = #tpu.dot_dimension_numbers<[1], [1], [0], [0], [0, 0, 1, 0], [], []>} : vector<2x128xf32>, vector<16x128xf32>, vector<2x16xf32> -> vector<2x16xf32>
    %97 = tpu.reciprocal %95 : vector<2x1xf32> -> vector<2x1xf32>
    %98 = vector.broadcast %97 : vector<2x1xf32> to vector<2x16xf32>
    %99 = arith.mulf %96, %98 : vector<2x16xf32>
    %c0_55 = arith.constant 0 : index
    %c48 = arith.constant 48 : index
    %100 = vector.load %arg7[%c0_55, %c48] : memref<2x128xf32, #tpu.memory_space<vmem>>, vector<2x16xf32>
    tpu.vector_store %arg7[%c0_55, %c48], %99 {strides = array<i32>} : memref<2x128xf32, #tpu.memory_space<vmem>>, vector<2x16xf32>,
    %cst_56 = arith.constant dense<0.000000e+00> : vector<16x128xf32>
    %101 = tpu.matmul %0, %80, %cst_56 {dimension_numbers = #tpu.dot_dimension_numbers<[1], [0], [0], [1], [0, 0, 1, 1], [], []>} : vector<16x16xf32>, vector<16x128xf32>, vector<16x128xf32> -> vector<16x128xf32>
    %c4 = arith.constant 4 : index
    %c0_57 = arith.constant 0 : index
    %c0_58 = arith.constant 0 : index
    %102 = vector.load %arg2[%c4, %c0_57, %c0_58] : memref<8x16x128xf32, #tpu.memory_space<vmem>>, vector<1x16x128xf32>
    %103 = vector.shape_cast %102 : vector<1x16x128xf32> to vector<16x128xf32>
    %104 = arith.addf %101, %103 : vector<16x128xf32>
    %cst_59 = arith.constant dense<0.000000e+00> : vector<8x128xf32>
    %105 = tpu.matmul %1, %104, %cst_59 {dimension_numbers = #tpu.dot_dimension_numbers<[1], [0], [0], [1], [0, 0, 1, 1], [], []>} : vector<8x16xf32>, vector<16x128xf32>, vector<8x128xf32> -> vector<8x128xf32>
    %c4_60 = arith.constant 4 : index
    %c0_61 = arith.constant 0 : index
    %c0_62 = arith.constant 0 : index
    %106 = vector.load %arg1[%c4_60, %c0_61, %c0_62] : memref<8x8x1xf32, #tpu.memory_space<vmem>>, vector<1x8x1xf32>
    %107 = vector.shape_cast %106 : vector<1x8x1xf32> to vector<8x1xf32>
    %108 = vector.broadcast %107 : vector<8x1xf32> to vector<8x128xf32>
    %109 = arith.subf %105, %108 : vector<8x128xf32>
    %110 = arith.mulf %109, %109 : vector<8x128xf32>
    %cst_63 = arith.constant dense<0.000000e+00> : vector<2x128xf32>
    %111 = tpu.matmul %5, %110, %cst_63 {dimension_numbers = #tpu.dot_dimension_numbers<[1], [0], [0], [1], [0, 0, 1, 1], [], []>} : vector<2x8xf32>, vector<8x128xf32>, vector<2x128xf32> -> vector<2x128xf32>
    %112 = arith.addf %88, %111 : vector<2x128xf32>
    %cst_64 = arith.constant dense<0xFF800000> : vector<2xf32>
    %113 = vector.multi_reduction <maximumf>, %112, %cst_64 [1] : vector<2x128xf32> to vector<2xf32>
    %114 = vector.shape_cast %113 : vector<2xf32> to vector<2x1xf32>
    %115 = vector.broadcast %114 : vector<2x1xf32> to vector<2x128xf32>
    %116 = arith.subf %112, %115 : vector<2x128xf32>
    %117 = math.exp %116 : vector<2x128xf32>
    %cst_65 = arith.constant dense<0.000000e+00> : vector<2xf32>
    %118 = vector.multi_reduction <add>, %117, %cst_65 [1] : vector<2x128xf32> to vector<2xf32>
    %119 = vector.shape_cast %118 : vector<2xf32> to vector<2x1xf32>
    %cst_66 = arith.constant dense<0.000000e+00> : vector<2x16xf32>
    %120 = tpu.matmul %117, %104, %cst_66 {dimension_numbers = #tpu.dot_dimension_numbers<[1], [1], [0], [0], [0, 0, 1, 0], [], []>} : vector<2x128xf32>, vector<16x128xf32>, vector<2x16xf32> -> vector<2x16xf32>
    %121 = tpu.reciprocal %119 : vector<2x1xf32> -> vector<2x1xf32>
    %122 = vector.broadcast %121 : vector<2x1xf32> to vector<2x16xf32>
    %123 = arith.mulf %120, %122 : vector<2x16xf32>
    %c0_67 = arith.constant 0 : index
    %c64 = arith.constant 64 : index
    %124 = vector.load %arg7[%c0_67, %c64] : memref<2x128xf32, #tpu.memory_space<vmem>>, vector<2x16xf32>
    tpu.vector_store %arg7[%c0_67, %c64], %123 {strides = array<i32>} : memref<2x128xf32, #tpu.memory_space<vmem>>, vector<2x16xf32>,
    %cst_68 = arith.constant dense<0.000000e+00> : vector<16x128xf32>
    %125 = tpu.matmul %0, %104, %cst_68 {dimension_numbers = #tpu.dot_dimension_numbers<[1], [0], [0], [1], [0, 0, 1, 1], [], []>} : vector<16x16xf32>, vector<16x128xf32>, vector<16x128xf32> -> vector<16x128xf32>
    %c5 = arith.constant 5 : index
    %c0_69 = arith.constant 0 : index
    %c0_70 = arith.constant 0 : index
    %126 = vector.load %arg2[%c5, %c0_69, %c0_70] : memref<8x16x128xf32, #tpu.memory_space<vmem>>, vector<1x16x128xf32>
    %127 = vector.shape_cast %126 : vector<1x16x128xf32> to vector<16x128xf32>
    %128 = arith.addf %125, %127 : vector<16x128xf32>
    %cst_71 = arith.constant dense<0.000000e+00> : vector<8x128xf32>
    %129 = tpu.matmul %1, %128, %cst_71 {dimension_numbers = #tpu.dot_dimension_numbers<[1], [0], [0], [1], [0, 0, 1, 1], [], []>} : vector<8x16xf32>, vector<16x128xf32>, vector<8x128xf32> -> vector<8x128xf32>
    %c5_72 = arith.constant 5 : index
    %c0_73 = arith.constant 0 : index
    %c0_74 = arith.constant 0 : index
    %130 = vector.load %arg1[%c5_72, %c0_73, %c0_74] : memref<8x8x1xf32, #tpu.memory_space<vmem>>, vector<1x8x1xf32>
    %131 = vector.shape_cast %130 : vector<1x8x1xf32> to vector<8x1xf32>
    %132 = vector.broadcast %131 : vector<8x1xf32> to vector<8x128xf32>
    %133 = arith.subf %129, %132 : vector<8x128xf32>
    %134 = arith.mulf %133, %133 : vector<8x128xf32>
    %cst_75 = arith.constant dense<0.000000e+00> : vector<2x128xf32>
    %135 = tpu.matmul %5, %134, %cst_75 {dimension_numbers = #tpu.dot_dimension_numbers<[1], [0], [0], [1], [0, 0, 1, 1], [], []>} : vector<2x8xf32>, vector<8x128xf32>, vector<2x128xf32> -> vector<2x128xf32>
    %136 = arith.addf %112, %135 : vector<2x128xf32>
    %cst_76 = arith.constant dense<0xFF800000> : vector<2xf32>
    %137 = vector.multi_reduction <maximumf>, %136, %cst_76 [1] : vector<2x128xf32> to vector<2xf32>
    %138 = vector.shape_cast %137 : vector<2xf32> to vector<2x1xf32>
    %139 = vector.broadcast %138 : vector<2x1xf32> to vector<2x128xf32>
    %140 = arith.subf %136, %139 : vector<2x128xf32>
    %141 = math.exp %140 : vector<2x128xf32>
    %cst_77 = arith.constant dense<0.000000e+00> : vector<2xf32>
    %142 = vector.multi_reduction <add>, %141, %cst_77 [1] : vector<2x128xf32> to vector<2xf32>
    %143 = vector.shape_cast %142 : vector<2xf32> to vector<2x1xf32>
    %cst_78 = arith.constant dense<0.000000e+00> : vector<2x16xf32>
    %144 = tpu.matmul %141, %128, %cst_78 {dimension_numbers = #tpu.dot_dimension_numbers<[1], [1], [0], [0], [0, 0, 1, 0], [], []>} : vector<2x128xf32>, vector<16x128xf32>, vector<2x16xf32> -> vector<2x16xf32>
    %145 = tpu.reciprocal %143 : vector<2x1xf32> -> vector<2x1xf32>
    %146 = vector.broadcast %145 : vector<2x1xf32> to vector<2x16xf32>
    %147 = arith.mulf %144, %146 : vector<2x16xf32>
    %c0_79 = arith.constant 0 : index
    %c80 = arith.constant 80 : index
    %148 = vector.load %arg7[%c0_79, %c80] : memref<2x128xf32, #tpu.memory_space<vmem>>, vector<2x16xf32>
    tpu.vector_store %arg7[%c0_79, %c80], %147 {strides = array<i32>} : memref<2x128xf32, #tpu.memory_space<vmem>>, vector<2x16xf32>,
    %cst_80 = arith.constant dense<0.000000e+00> : vector<16x128xf32>
    %149 = tpu.matmul %0, %128, %cst_80 {dimension_numbers = #tpu.dot_dimension_numbers<[1], [0], [0], [1], [0, 0, 1, 1], [], []>} : vector<16x16xf32>, vector<16x128xf32>, vector<16x128xf32> -> vector<16x128xf32>
    %c6 = arith.constant 6 : index
    %c0_81 = arith.constant 0 : index
    %c0_82 = arith.constant 0 : index
    %150 = vector.load %arg2[%c6, %c0_81, %c0_82] : memref<8x16x128xf32, #tpu.memory_space<vmem>>, vector<1x16x128xf32>
    %151 = vector.shape_cast %150 : vector<1x16x128xf32> to vector<16x128xf32>
    %152 = arith.addf %149, %151 : vector<16x128xf32>
    %cst_83 = arith.constant dense<0.000000e+00> : vector<8x128xf32>
    %153 = tpu.matmul %1, %152, %cst_83 {dimension_numbers = #tpu.dot_dimension_numbers<[1], [0], [0], [1], [0, 0, 1, 1], [], []>} : vector<8x16xf32>, vector<16x128xf32>, vector<8x128xf32> -> vector<8x128xf32>
    %c6_84 = arith.constant 6 : index
    %c0_85 = arith.constant 0 : index
    %c0_86 = arith.constant 0 : index
    %154 = vector.load %arg1[%c6_84, %c0_85, %c0_86] : memref<8x8x1xf32, #tpu.memory_space<vmem>>, vector<1x8x1xf32>
    %155 = vector.shape_cast %154 : vector<1x8x1xf32> to vector<8x1xf32>
    %156 = vector.broadcast %155 : vector<8x1xf32> to vector<8x128xf32>
    %157 = arith.subf %153, %156 : vector<8x128xf32>
    %158 = arith.mulf %157, %157 : vector<8x128xf32>
    %cst_87 = arith.constant dense<0.000000e+00> : vector<2x128xf32>
    %159 = tpu.matmul %5, %158, %cst_87 {dimension_numbers = #tpu.dot_dimension_numbers<[1], [0], [0], [1], [0, 0, 1, 1], [], []>} : vector<2x8xf32>, vector<8x128xf32>, vector<2x128xf32> -> vector<2x128xf32>
    %160 = arith.addf %136, %159 : vector<2x128xf32>
    %cst_88 = arith.constant dense<0xFF800000> : vector<2xf32>
    %161 = vector.multi_reduction <maximumf>, %160, %cst_88 [1] : vector<2x128xf32> to vector<2xf32>
    %162 = vector.shape_cast %161 : vector<2xf32> to vector<2x1xf32>
    %163 = vector.broadcast %162 : vector<2x1xf32> to vector<2x128xf32>
    %164 = arith.subf %160, %163 : vector<2x128xf32>
    %165 = math.exp %164 : vector<2x128xf32>
    %cst_89 = arith.constant dense<0.000000e+00> : vector<2xf32>
    %166 = vector.multi_reduction <add>, %165, %cst_89 [1] : vector<2x128xf32> to vector<2xf32>
    %167 = vector.shape_cast %166 : vector<2xf32> to vector<2x1xf32>
    %cst_90 = arith.constant dense<0.000000e+00> : vector<2x16xf32>
    %168 = tpu.matmul %165, %152, %cst_90 {dimension_numbers = #tpu.dot_dimension_numbers<[1], [1], [0], [0], [0, 0, 1, 0], [], []>} : vector<2x128xf32>, vector<16x128xf32>, vector<2x16xf32> -> vector<2x16xf32>
    %169 = tpu.reciprocal %167 : vector<2x1xf32> -> vector<2x1xf32>
    %170 = vector.broadcast %169 : vector<2x1xf32> to vector<2x16xf32>
    %171 = arith.mulf %168, %170 : vector<2x16xf32>
    %c0_91 = arith.constant 0 : index
    %c96 = arith.constant 96 : index
    %172 = vector.load %arg7[%c0_91, %c96] : memref<2x128xf32, #tpu.memory_space<vmem>>, vector<2x16xf32>
    tpu.vector_store %arg7[%c0_91, %c96], %171 {strides = array<i32>} : memref<2x128xf32, #tpu.memory_space<vmem>>, vector<2x16xf32>,
    %cst_92 = arith.constant dense<0.000000e+00> : vector<16x128xf32>
    %173 = tpu.matmul %0, %152, %cst_92 {dimension_numbers = #tpu.dot_dimension_numbers<[1], [0], [0], [1], [0, 0, 1, 1], [], []>} : vector<16x16xf32>, vector<16x128xf32>, vector<16x128xf32> -> vector<16x128xf32>
    %c7 = arith.constant 7 : index
    %c0_93 = arith.constant 0 : index
    %c0_94 = arith.constant 0 : index
    %174 = vector.load %arg2[%c7, %c0_93, %c0_94] : memref<8x16x128xf32, #tpu.memory_space<vmem>>, vector<1x16x128xf32>
    %175 = vector.shape_cast %174 : vector<1x16x128xf32> to vector<16x128xf32>
    %176 = arith.addf %173, %175 : vector<16x128xf32>
    %cst_95 = arith.constant dense<0.000000e+00> : vector<8x128xf32>
    %177 = tpu.matmul %1, %176, %cst_95 {dimension_numbers = #tpu.dot_dimension_numbers<[1], [0], [0], [1], [0, 0, 1, 1], [], []>} : vector<8x16xf32>, vector<16x128xf32>, vector<8x128xf32> -> vector<8x128xf32>
    %c7_96 = arith.constant 7 : index
    %c0_97 = arith.constant 0 : index
    %c0_98 = arith.constant 0 : index
    %178 = vector.load %arg1[%c7_96, %c0_97, %c0_98] : memref<8x8x1xf32, #tpu.memory_space<vmem>>, vector<1x8x1xf32>
    %179 = vector.shape_cast %178 : vector<1x8x1xf32> to vector<8x1xf32>
    %180 = vector.broadcast %179 : vector<8x1xf32> to vector<8x128xf32>
    %181 = arith.subf %177, %180 : vector<8x128xf32>
    %182 = arith.mulf %181, %181 : vector<8x128xf32>
    %cst_99 = arith.constant dense<0.000000e+00> : vector<2x128xf32>
    %183 = tpu.matmul %5, %182, %cst_99 {dimension_numbers = #tpu.dot_dimension_numbers<[1], [0], [0], [1], [0, 0, 1, 1], [], []>} : vector<2x8xf32>, vector<8x128xf32>, vector<2x128xf32> -> vector<2x128xf32>
    %184 = arith.addf %160, %183 : vector<2x128xf32>
    %cst_100 = arith.constant dense<0xFF800000> : vector<2xf32>
    %185 = vector.multi_reduction <maximumf>, %184, %cst_100 [1] : vector<2x128xf32> to vector<2xf32>
    %186 = vector.shape_cast %185 : vector<2xf32> to vector<2x1xf32>
    %187 = vector.broadcast %186 : vector<2x1xf32> to vector<2x128xf32>
    %188 = arith.subf %184, %187 : vector<2x128xf32>
    %189 = math.exp %188 : vector<2x128xf32>
    %cst_101 = arith.constant dense<0.000000e+00> : vector<2xf32>
    %190 = vector.multi_reduction <add>, %189, %cst_101 [1] : vector<2x128xf32> to vector<2xf32>
    %191 = vector.shape_cast %190 : vector<2xf32> to vector<2x1xf32>
    %cst_102 = arith.constant dense<0.000000e+00> : vector<2x16xf32>
    %192 = tpu.matmul %189, %176, %cst_102 {dimension_numbers = #tpu.dot_dimension_numbers<[1], [1], [0], [0], [0, 0, 1, 0], [], []>} : vector<2x128xf32>, vector<16x128xf32>, vector<2x16xf32> -> vector<2x16xf32>
    %193 = tpu.reciprocal %191 : vector<2x1xf32> -> vector<2x1xf32>
    %194 = vector.broadcast %193 : vector<2x1xf32> to vector<2x16xf32>
    %195 = arith.mulf %192, %194 : vector<2x16xf32>
    %c0_103 = arith.constant 0 : index
    %c112 = arith.constant 112 : index
    %196 = vector.load %arg7[%c0_103, %c112] : memref<2x128xf32, #tpu.memory_space<vmem>>, vector<2x16xf32>
    tpu.vector_store %arg7[%c0_103, %c112], %195 {strides = array<i32>} : memref<2x128xf32, #tpu.memory_space<vmem>>, vector<2x16xf32>,
    return
  }
  func.func @transform_0(%arg0: i32) -> (i32, i32, i32) {
    %c0_i32 = arith.constant 0 : i32
    %c0_i32_0 = arith.constant 0 : i32
    %c0_i32_1 = arith.constant 0 : i32
    %c0_i32_2 = arith.constant 0 : i32
    return %c0_i32, %c0_i32_0, %c0_i32_1 : i32, i32, i32
  }
  func.func @transform_1(%arg0: i32) -> (i32, i32, i32) {
    %c0_i32 = arith.constant 0 : i32
    %c0_i32_0 = arith.constant 0 : i32
    %c0_i32_1 = arith.constant 0 : i32
    %c0_i32_2 = arith.constant 0 : i32
    return %c0_i32, %c0_i32_0, %c0_i32_1 : i32, i32, i32
  }
  func.func @transform_2(%arg0: i32) -> (i32, i32) {
    %c0_i32 = arith.constant 0 : i32
    %c0_i32_0 = arith.constant 0 : i32
    %c0_i32_1 = arith.constant 0 : i32
    return %c0_i32, %c0_i32_0 : i32, i32
  }
  func.func @transform_3(%arg0: i32) -> (i32, i32) {
    %c0_i32 = arith.constant 0 : i32
    %c0_i32_0 = arith.constant 0 : i32
    %c0_i32_1 = arith.constant 0 : i32
    return %c0_i32, %c0_i32_0 : i32, i32
  }
  func.func @transform_4(%arg0: i32) -> (i32, i32) {
    %c0_i32 = arith.constant 0 : i32
    %c0_i32_0 = arith.constant 0 : i32
    %c0_i32_1 = arith.constant 0 : i32
    return %c0_i32, %c0_i32_0 : i32, i32
  }
  func.func @transform_5(%arg0: i32) -> (i32, i32) {
    %c0_i32 = arith.constant 0 : i32
    %c0_i32_0 = arith.constant 0 : i32
    %c0_i32_1 = arith.constant 0 : i32
    return %c0_i32, %c0_i32_0 : i32, i32
  }
  func.func @transform_6(%arg0: i32) -> (i32, i32) {
    %c0_i32 = arith.constant 0 : i32
    %c0_i32_0 = arith.constant 0 : i32
    %c0_i32_1 = arith.constant 0 : i32
    return %c0_i32, %c0_i32_0 : i32, i32
  }
}

</mosaic_0001>

<llo_original>
// kernel: tpu_custom_call.1
$region0: #{tpu_custom_call.1}
  #allocation0 [shape = 'u32[]', space=smem, size = 0x4, offset = 0x4, fixed_abs, tag = 'smem constant byte address 0x4 - core index']
  #allocation1 [shape = 'u32[144,128]{1,0:T(1,128)}', space=vmem, size = 0x12000, scoped, tag = 'internal scratch']
  %s0 = inlined_call_operand.vmem [shape: f32[8,8,1], index: 0, kind: input, shape index: {}]
  %s1 = inlined_call_operand.hbm [shape: f32[8,16,128], index: 1, kind: input, shape index: {}]
  %s2 = inlined_call_operand.vmem [shape: f32[16,16], index: 2, kind: input, shape index: {}]
  %s3 = inlined_call_operand.vmem [shape: f32[8,16], index: 3, kind: input, shape index: {}]
  %s4 = inlined_call_operand.vmem [shape: f32[16,1], index: 4, kind: input, shape index: {}]
  %s5 = inlined_call_operand.vmem [shape: f32[2,8], index: 5, kind: input, shape index: {}]
  %s6 = inlined_call_operand.hbm [shape: f32[2,128], index: 6, kind: output, shape index: {}]
  %s7 = sld [smem:[#allocation0]]
  $region38: #{tpu_custom_call.1} parent=0
    _
  %s9 = ssub.s32 1, %s7
  %s10 = scalar_select 0, %s9, %s7
  $region1: #{tpu_custom_call.1} parent=0
    #allocation2 [shape = 'u8[65536]{0}', space=vmem, size = 0x10000, scoped, tag = 'input window, operand 1, single buffered']
    #allocation3 [shape = 's32[1]{0}', space=sflag, size = 0x4, scoped, tag = 'scoped memory for tpu_custom_call.1']
    #allocation4 [shape = 's32[1]{0}', space=sflag, size = 0x4, scoped, tag = 'scoped memory for tpu_custom_call.1']
    #allocation5 [shape = 'u8[1024]{0}', space=vmem, size = 0x400, scoped, tag = 'output window, operand 0, single buffered']
    %11 = vsyncpa [#allocation3], 0
    %12 = vsyncpa [#allocation4], 0
    // Predicated region
    $region2: #{tpu_custom_call.1} parent=1 // pred_check
      _
    $region3: #{tpu_custom_call.1} parent=1 // pred_check_branch
      %14 = sbr.rel (0) target = $region5
    $region4: #{tpu_custom_call.1} parent=1 // pred_region
      _
    $region5: #{tpu_custom_call.1} parent=1 // pred_fallthru
      _
    // Predicated region
    $region6: #{tpu_custom_call.1} parent=1 // pred_check
      _
    $region7: #{tpu_custom_call.1} parent=1 // pred_check_branch
      %16 = sbr.rel (0) target = $region9
    $region8: #{tpu_custom_call.1} parent=1 // pred_region
      %s18 = ssub.s32 2048, 2048
      %19 = vsyncadd [#allocation3], %s18
      %s20 = sshll.u32 [#allocation2], 4
      %s21 = int_to_ptr.vmem [resolvable:$true] %s20
      %26 = dma.hbm_to_vmem [thread:$0]  %s1, 2048, %s21, [#allocation3], 128, 128, 8
    $region9: #{tpu_custom_call.1} parent=1 // pred_fallthru
      _
    // Predicated region
    $region10: #{tpu_custom_call.1} parent=1 // pred_check
      _
    $region11: #{tpu_custom_call.1} parent=1 // pred_check_branch
      %28 = sbr.rel (0) target = $region13
    $region12: #{tpu_custom_call.1} parent=1 // pred_region
      _
    $region13: #{tpu_custom_call.1} parent=1 // pred_fallthru
      _
    // Predicated region
    $region14: #{tpu_custom_call.1} parent=1 // pred_check
      _
    $region15: #{tpu_custom_call.1} parent=1 // pred_check_branch
      %30 = sbr.rel (0) target = $region17
    $region16: #{tpu_custom_call.1} parent=1 // pred_region
      _
    $region17: #{tpu_custom_call.1} parent=1 // pred_fallthru
      _
    // Predicated region
    $region18: #{tpu_custom_call.1} parent=1 // pred_check
      _
    $region19: #{tpu_custom_call.1} parent=1 // pred_check_branch
      %32 = sbr.rel (0) target = $region21
    $region20: #{tpu_custom_call.1} parent=1 // pred_region
      _
    $region21: #{tpu_custom_call.1} parent=1 // pred_fallthru
      _
    // Predicated region
    $region22: #{tpu_custom_call.1} parent=1 // pred_check
      _
    $region23: #{tpu_custom_call.1} parent=1 // pred_check_branch
      %34 = sbr.rel (0) target = $region25
    $region24: #{tpu_custom_call.1} parent=1 // pred_region
      _
    $region25: #{tpu_custom_call.1} parent=1 // pred_fallthru
      _
    // Predicated region
    $region26: #{tpu_custom_call.1} parent=1 // pred_check
      _
    $region27: #{tpu_custom_call.1} parent=1 // pred_check_branch
      %36 = sbr.rel (0) target = $region29
    $region28: #{tpu_custom_call.1} parent=1 // pred_region
      %37 = dma.done [#allocation3], 2048
    $region29: #{tpu_custom_call.1} parent=1 // pred_fallthru
      _
    %v38 = vld [vmem:[%s2] sm:$0xff]
    %v39 = vld [vmem:[%s2 + $0x8] sm:$0xff]
    %v40 = vld [vmem:[%s3] sm:$0xff]
    %v41 = vld [vmem:[%s4] sm:$0xff]
    %v42 = vld [vmem:[%s4 + $0x8] sm:$0xff]
    %v43 = vld [vmem:[%s5] sm:$0x3]
    %v44 = vmul.f32 %v43, -1.0
    %v45 = vld [vmem:[#allocation2] sm:$0xff]
    %v46 = vld [vmem:[#allocation2 + $0x8] sm:$0xff]
    %48 = vset.pattern.permute.xlu0 0
    %49 = vperm.xlu0 %48, %v41
    %v50 = vpop.permute.xlu0 %49
    %53 = vset.pattern.permute.xlu0 0
    %54 = vperm.xlu0 %53, %v42
    %v55 = vpop.permute.xlu0 %54
    %v57 = vadd.f32 %v45, %v50
    %v58 = vadd.f32 %v46, %v55
    %vm59 = vcmask 130048
    %v61 = vsel %vm59, %v40, 0
    %63 = vmatprep.subr.mxu0 0.0
    %64 = vmatpush1.msra.mxu0 %v57
    %65 = vmatprep.subr.mxu0 0.0
    %66 = vmatpush1.msra.mxu0 %v58
    %67 = vmatprep.subr.mxu0 0.0
    %68 = vmatpush1.msra.mxu0 0.0
    %69 = vmatprep.subr.mxu0 0.0
    %70 = vmatpush1.msra.mxu0 0.0
    %71 = vmatprep.subr.mxu0 0.0
    %72 = vmatpush1.msra.mxu0 0.0
    %73 = vmatprep.subr.mxu0 0.0
    %74 = vmatpush1.msra.mxu0 0.0
    %75 = vmatprep.subr.mxu0 0.0
    %76 = vmatpush1.msra.mxu0 0.0
    %77 = vmatprep.subr.mxu0 0.0
    %78 = vmatpush1.msra.mxu0 0.0
    %79 = vmatprep.subr.mxu0 0.0
    %80 = vmatpush1.msra.mxu0 0.0
    %81 = vmatprep.subr.mxu0 0.0
    %82 = vmatpush1.msra.mxu0 0.0
    %83 = vmatprep.subr.mxu0 0.0
    %84 = vmatpush1.msra.mxu0 0.0
    %85 = vmatprep.subr.mxu0 0.0
    %86 = vmatpush1.msra.mxu0 0.0
    %87 = vmatprep.subr.mxu0 0.0
    %88 = vmatpush1.msra.mxu0 0.0
    %89 = vmatprep.subr.mxu0 0.0
    %90 = vmatpush1.msra.mxu0 0.0
    %91 = vmatprep.subr.mxu0 0.0
    %92 = vmatpush1.msra.mxu0 0.0
    %93 = vmatprep.subr.mxu0 0.0
    %94 = vmatpush1.msra.mxu0 0.0
    %95 = vmatprep.subr.mxu0 0.0
    %96 = vmatpush1.msra.mxu0 0.0
    %97 = vmatprep.subr.mxu0 0.0
    %98 = vmatpush1.msra.mxu0 0.0
    %99 = vmatprep.subr.mxu0 0.0
    %100 = vmatpush1.msra.mxu0 0.0
    %101 = vmatprep.subr.mxu0 0.0
    %102 = vmatpush1.msra.mxu0 0.0
    %103 = vmatprep.subr.mxu0 0.0
    %104 = vmatpush1.msra.mxu0 0.0
    %105 = vmatprep.subr.mxu0 0.0
    %106 = vmatpush1.msra.mxu0 0.0
    %107 = vmatprep.subr.mxu0 0.0
    %108 = vmatpush1.msra.mxu0 0.0
    %109 = vmatprep.subr.mxu0 0.0
    %110 = vmatpush1.msra.mxu0 0.0
    %111 = vmatprep.subr.mxu0 0.0
    %112 = vmatpush1.msra.mxu0 0.0
    %113 = vmatprep.subr.mxu0 0.0
    %114 = vmatpush1.msra.mxu0 0.0
    %115 = vmatprep.subr.mxu0 0.0
    %116 = vmatpush1.msra.mxu0 0.0
    %117 = vmatprep.subr.mxu0 0.0
    %118 = vmatpush1.msra.mxu0 0.0
    %119 = vmatprep.subr.mxu0 0.0
    %120 = vmatpush1.msra.mxu0 0.0
    %121 = vmatprep.subr.mxu0 0.0
    %122 = vmatpush1.msra.mxu0 0.0
    %123 = vmatprep.subr.mxu0 0.0
    %124 = vmatpush1.msra.mxu0 0.0
    %125 = vmatprep.subr.mxu0 0.0
    %126 = vmatpush1.msra.mxu0 0.0
    %127 = vmatprep.mubr.f32.mxu0 0.0
    %128 = vmatmul.mubr.f32.gmra.mrb[0].mxu0 %v61
    %v129 = vpop.f32.mrb[0].mxu0
    %v130 = vadd.f32 0.0, %v129
    %v131 = vpop.f32.mrb[0].mxu0
    %132 = vdwg.mxu0
    %v133 = vld [vmem:[%s0] sm:$0xff]
    %135 = vset.pattern.permute.xlu0 0
    %136 = vperm.xlu0 %135, %v133
    %v137 = vpop.permute.xlu0 %136
    %v139 = vsub.f32 %v130, %v137
    %v140 = vmul.f32 %v139, %v139
    %vm141 = vcmask 64512
    %v143 = vsel %vm141, %v44, 0
    %145 = vmatprep.subr.mxu0 0.0
    %146 = vmatpush1.msra.mxu0 %v140
    %147 = vmatprep.subr.mxu0 0.0
    %148 = vmatpush1.msra.mxu0 0.0
    %149 = vmatprep.subr.mxu0 0.0
    %150 = vmatpush1.msra.mxu0 0.0
    %151 = vmatprep.subr.mxu0 0.0
    %152 = vmatpush1.msra.mxu0 0.0
    %153 = vmatprep.subr.mxu0 0.0
    %154 = vmatpush1.msra.mxu0 0.0
    %155 = vmatprep.subr.mxu0 0.0
    %156 = vmatpush1.msra.mxu0 0.0
    %157 = vmatprep.subr.mxu0 0.0
    %158 = vmatpush1.msra.mxu0 0.0
    %159 = vmatprep.subr.mxu0 0.0
    %160 = vmatpush1.msra.mxu0 0.0
    %161 = vmatprep.subr.mxu0 0.0
    %162 = vmatpush1.msra.mxu0 0.0
    %163 = vmatprep.subr.mxu0 0.0
    %164 = vmatpush1.msra.mxu0 0.0
    %165 = vmatprep.subr.mxu0 0.0
    %166 = vmatpush1.msra.mxu0 0.0
    %167 = vmatprep.subr.mxu0 0.0
    %168 = vmatpush1.msra.mxu0 0.0
    %169 = vmatprep.subr.mxu0 0.0
    %170 = vmatpush1.msra.mxu0 0.0
    %171 = vmatprep.subr.mxu0 0.0
    %172 = vmatpush1.msra.mxu0 0.0
    %173 = vmatprep.subr.mxu0 0.0
    %174 = vmatpush1.msra.mxu0 0.0
    %175 = vmatprep.subr.mxu0 0.0
    %176 = vmatpush1.msra.mxu0 0.0
    %177 = vmatprep.subr.mxu0 0.0
    %178 = vmatpush1.msra.mxu0 0.0
    %179 = vmatprep.subr.mxu0 0.0
    %180 = vmatpush1.msra.mxu0 0.0
    %181 = vmatprep.subr.mxu0 0.0
    %182 = vmatpush1.msra.mxu0 0.0
    %183 = vmatprep.subr.mxu0 0.0
    %184 = vmatpush1.msra.mxu0 0.0
    %185 = vmatprep.subr.mxu0 0.0
    %186 = vmatpush1.msra.mxu0 0.0
    %187 = vmatprep.subr.mxu0 0.0
    %188 = vmatpush1.msra.mxu0 0.0
    %189 = vmatprep.subr.mxu0 0.0
    %190 = vmatpush1.msra.mxu0 0.0
    %191 = vmatprep.subr.mxu0 0.0
    %192 = vmatpush1.msra.mxu0 0.0
    %193 = vmatprep.subr.mxu0 0.0
    %194 = vmatpush1.msra.mxu0 0.0
    %195 = vmatprep.subr.mxu0 0.0
    %196 = vmatpush1.msra.mxu0 0.0
    %197 = vmatprep.subr.mxu0 0.0
    %198 = vmatpush1.msra.mxu0 0.0
    %199 = vmatprep.subr.mxu0 0.0
    %200 = vmatpush1.msra.mxu0 0.0
    %201 = vmatprep.subr.mxu0 0.0
    %202 = vmatpush1.msra.mxu0 0.0
    %203 = vmatprep.subr.mxu0 0.0
    %204 = vmatpush1.msra.mxu0 0.0
    %205 = vmatprep.subr.mxu0 0.0
    %206 = vmatpush1.msra.mxu0 0.0
    %207 = vmatprep.subr.mxu0 0.0
    %208 = vmatpush1.msra.mxu0 0.0
    %209 = vmatprep.mubr.f32.mxu0 0.0
    %210 = vmatmul.mubr.f32.gmra.mrb[0].mxu0 %v143
    %v211 = vpop.f32.mrb[0].mxu0
    %v212 = vadd.f32 0.0, %v211
    %v213 = vpop.f32.mrb[0].mxu0
    %214 = vdwg.mxu0
    %vm215 = vcmask 1041408
    %v216 = vsel %vm215, %v212, -inf
    %217 = vmax.xlane.f32.xlu0 %v216
    %v218 = vpop.xlane.xlu0 %217
    %v219 = vsub.f32 %v212, %v218
    %v220 = vmul.f32 %v219, 1.442695
    %v221 = vpow.pop %v220
    %v222 = vsel %vm215, %v221, 0.0
    %223 = vadd.xlane.f32.xlu0 %v222
    %v224 = vpop.xlane.xlu0 %223
    %225 = vmatprep.subr.mxu0 0.0
    %226 = vmatpush1.xpose.msra.mxu0 %v57
    %227 = vmatprep.subr.mxu0 0.0
    %228 = vmatpush1.xpose.msra.mxu0 %v58
    %229 = vmatprep.subr.mxu0 0.0
    %230 = vmatpush1.xpose.msra.mxu0 0.0
    %231 = vmatprep.subr.mxu0 0.0
    %232 = vmatpush1.xpose.msra.mxu0 0.0
    %233 = vmatprep.subr.mxu0 0.0
    %234 = vmatpush1.xpose.msra.mxu0 0.0
    %235 = vmatprep.subr.mxu0 0.0
    %236 = vmatpush1.xpose.msra.mxu0 0.0
    %237 = vmatprep.subr.mxu0 0.0
    %238 = vmatpush1.xpose.msra.mxu0 0.0
    %239 = vmatprep.subr.mxu0 0.0
    %240 = vmatpush1.xpose.msra.mxu0 0.0
    %241 = vmatprep.subr.mxu0 0.0
    %242 = vmatpush1.xpose.msra.mxu0 0.0
    %243 = vmatprep.subr.mxu0 0.0
    %244 = vmatpush1.xpose.msra.mxu0 0.0
    %245 = vmatprep.subr.mxu0 0.0
    %246 = vmatpush1.xpose.msra.mxu0 0.0
    %247 = vmatprep.subr.mxu0 0.0
    %248 = vmatpush1.xpose.msra.mxu0 0.0
    %249 = vmatprep.subr.mxu0 0.0
    %250 = vmatpush1.xpose.msra.mxu0 0.0
    %251 = vmatprep.subr.mxu0 0.0
    %252 = vmatpush1.xpose.msra.mxu0 0.0
    %253 = vmatprep.subr.mxu0 0.0
    %254 = vmatpush1.xpose.msra.mxu0 0.0
    %255 = vmatprep.subr.mxu0 0.0
    %256 = vmatpush1.xpose.msra.mxu0 0.0
    %257 = vmatprep.subr.mxu0 0.0
    %258 = vmatpush1.xpose.msra.mxu0 0.0
    %259 = vmatprep.subr.mxu0 0.0
    %260 = vmatpush1.xpose.msra.mxu0 0.0
    %261 = vmatprep.subr.mxu0 0.0
    %262 = vmatpush1.xpose.msra.mxu0 0.0
    %263 = vmatprep.subr.mxu0 0.0
    %264 = vmatpush1.xpose.msra.mxu0 0.0
    %265 = vmatprep.subr.mxu0 0.0
    %266 = vmatpush1.xpose.msra.mxu0 0.0
    %267 = vmatprep.subr.mxu0 0.0
    %268 = vmatpush1.xpose.msra.mxu0 0.0
    %269 = vmatprep.subr.mxu0 0.0
    %270 = vmatpush1.xpose.msra.mxu0 0.0
    %271 = vmatprep.subr.mxu0 0.0
    %272 = vmatpush1.xpose.msra.mxu0 0.0
    %273 = vmatprep.subr.mxu0 0.0
    %274 = vmatpush1.xpose.msra.mxu0 0.0
    %275 = vmatprep.subr.mxu0 0.0
    %276 = vmatpush1.xpose.msra.mxu0 0.0
    %277 = vmatprep.subr.mxu0 0.0
    %278 = vmatpush1.xpose.msra.mxu0 0.0
    %279 = vmatprep.subr.mxu0 0.0
    %280 = vmatpush1.xpose.msra.mxu0 0.0
    %281 = vmatprep.subr.mxu0 0.0
    %282 = vmatpush1.xpose.msra.mxu0 0.0
    %283 = vmatprep.subr.mxu0 0.0
    %284 = vmatpush1.xpose.msra.mxu0 0.0
    %285 = vmatprep.subr.mxu0 0.0
    %286 = vmatpush1.xpose.msra.mxu0 0.0
    %287 = vmatprep.subr.mxu0 0.0
    %288 = vmatpush1.xpose.msra.mxu0 0.0
    %289 = vmatprep.mubr.f32.mxu0 0.0
    %290 = vmatmul.mubr.f32.gmra.mrb[0].mxu0 %v221
    %v291 = vpop.f32.mrb[0].mxu0
    %v292 = vadd.f32 0.0, %v291
    %v293 = vpop.f32.mrb[0].mxu0
    %294 = vdwg.mxu0
    %v295 = vrcp.pop %v224
    %v296 = vmul.f32 %v292, %v295
    %vm297 = vcmask 123904
    %298 = vst.msk [vmem:[#allocation5] sm:$0x3] %vm297, %v296
    %s299 = scalar_lea.vmem [#allocation2], 16
    %v300 = vld [vmem:[%s299] sm:$0xff]
    %v301 = vld [vmem:[%s299 + $0x8] sm:$0xff]
    %v303 = vsel %vm59, %v38, 0
    %v306 = vsel %vm59, %v39, 0
    %308 = vmatprep.subr.mxu0 0.0
    %309 = vmatpush1.msra.mxu0 %v57
    %310 = vmatprep.subr.mxu0 0.0
    %311 = vmatpush1.msra.mxu0 %v58
    %312 = vmatprep.subr.mxu0 0.0
    %313 = vmatpush1.msra.mxu0 0.0
    %314 = vmatprep.subr.mxu0 0.0
    %315 = vmatpush1.msra.mxu0 0.0
    %316 = vmatprep.subr.mxu0 0.0
    %317 = vmatpush1.msra.mxu0 0.0
    %318 = vmatprep.subr.mxu0 0.0
    %319 = vmatpush1.msra.mxu0 0.0
    %320 = vmatprep.subr.mxu0 0.0
    %321 = vmatpush1.msra.mxu0 0.0
    %322 = vmatprep.subr.mxu0 0.0
    %323 = vmatpush1.msra.mxu0 0.0
    %324 = vmatprep.subr.mxu0 0.0
    %325 = vmatpush1.msra.mxu0 0.0
    %326 = vmatprep.subr.mxu0 0.0
    %327 = vmatpush1.msra.mxu0 0.0
    %328 = vmatprep.subr.mxu0 0.0
    %329 = vmatpush1.msra.mxu0 0.0
    %330 = vmatprep.subr.mxu0 0.0
    %331 = vmatpush1.msra.mxu0 0.0
    %332 = vmatprep.subr.mxu0 0.0
    %333 = vmatpush1.msra.mxu0 0.0
    %334 = vmatprep.subr.mxu0 0.0
    %335 = vmatpush1.msra.mxu0 0.0
    %336 = vmatprep.subr.mxu0 0.0
    %337 = vmatpush1.msra.mxu0 0.0
    %338 = vmatprep.subr.mxu0 0.0
    %339 = vmatpush1.msra.mxu0 0.0
    %340 = vmatprep.subr.mxu0 0.0
    %341 = vmatpush1.msra.mxu0 0.0
    %342 = vmatprep.subr.mxu0 0.0
    %343 = vmatpush1.msra.mxu0 0.0
    %344 = vmatprep.subr.mxu0 0.0
    %345 = vmatpush1.msra.mxu0 0.0
    %346 = vmatprep.subr.mxu0 0.0
    %347 = vmatpush1.msra.mxu0 0.0
    %348 = vmatprep.subr.mxu0 0.0
    %349 = vmatpush1.msra.mxu0 0.0
    %350 = vmatprep.subr.mxu0 0.0
    %351 = vmatpush1.msra.mxu0 0.0
    %352 = vmatprep.subr.mxu0 0.0
    %353 = vmatpush1.msra.mxu0 0.0
    %354 = vmatprep.subr.mxu0 0.0
    %355 = vmatpush1.msra.mxu0 0.0
    %356 = vmatprep.subr.mxu0 0.0
    %357 = vmatpush1.msra.mxu0 0.0
    %358 = vmatprep.subr.mxu0 0.0
    %359 = vmatpush1.msra.mxu0 0.0
    %360 = vmatprep.subr.mxu0 0.0
    %361 = vmatpush1.msra.mxu0 0.0
    %362 = vmatprep.subr.mxu0 0.0
    %363 = vmatpush1.msra.mxu0 0.0
    %364 = vmatprep.subr.mxu0 0.0
    %365 = vmatpush1.msra.mxu0 0.0
    %366 = vmatprep.subr.mxu0 0.0
    %367 = vmatpush1.msra.mxu0 0.0
    %368 = vmatprep.subr.mxu0 0.0
    %369 = vmatpush1.msra.mxu0 0.0
    %370 = vmatprep.subr.mxu0 0.0
    %371 = vmatpush1.msra.mxu0 0.0
    %372 = vmatprep.mubr.f32.mxu0 0.0
    %373 = vmatmul.mubr.f32.gmra.mrb[0].mxu0 %v303
    %v374 = vpop.f32.mrb[0].mxu0
    %v375 = vadd.f32 %v300, %v374
    %v376 = vpop.f32.mrb[0].mxu0
    %377 = vmatprep.mubr.f32.mxu0 0.0
    %378 = vmatmul.mubr.f32.gmra.mrb[0].mxu0 %v306
    %v379 = vpop.f32.mrb[0].mxu0
    %v380 = vadd.f32 %v301, %v379
    %v381 = vpop.f32.mrb[0].mxu0
    %382 = vdwg.mxu0
    %383 = vmatprep.subr.mxu0 0.0
    %384 = vmatpush1.msra.mxu0 %v375
    %385 = vmatprep.subr.mxu0 0.0
    %386 = vmatpush1.msra.mxu0 %v380
    %387 = vmatprep.subr.mxu0 0.0
    %388 = vmatpush1.msra.mxu0 0.0
    %389 = vmatprep.subr.mxu0 0.0
    %390 = vmatpush1.msra.mxu0 0.0
    %391 = vmatprep.subr.mxu0 0.0
    %392 = vmatpush1.msra.mxu0 0.0
    %393 = vmatprep.subr.mxu0 0.0
    %394 = vmatpush1.msra.mxu0 0.0
    %395 = vmatprep.subr.mxu0 0.0
    %396 = vmatpush1.msra.mxu0 0.0
    %397 = vmatprep.subr.mxu0 0.0
    %398 = vmatpush1.msra.mxu0 0.0
    %399 = vmatprep.subr.mxu0 0.0
    %400 = vmatpush1.msra.mxu0 0.0
    %401 = vmatprep.subr.mxu0 0.0
    %402 = vmatpush1.msra.mxu0 0.0
    %403 = vmatprep.subr.mxu0 0.0
    %404 = vmatpush1.msra.mxu0 0.0
    %405 = vmatprep.subr.mxu0 0.0
    %406 = vmatpush1.msra.mxu0 0.0
    %407 = vmatprep.subr.mxu0 0.0
    %408 = vmatpush1.msra.mxu0 0.0
    %409 = vmatprep.subr.mxu0 0.0
    %410 = vmatpush1.msra.mxu0 0.0
    %411 = vmatprep.subr.mxu0 0.0
    %412 = vmatpush1.msra.mxu0 0.0
    %413 = vmatprep.subr.mxu0 0.0
    %414 = vmatpush1.msra.mxu0 0.0
    %415 = vmatprep.subr.mxu0 0.0
    %416 = vmatpush1.msra.mxu0 0.0
    %417 = vmatprep.subr.mxu0 0.0
    %418 = vmatpush1.msra.mxu0 0.0
    %419 = vmatprep.subr.mxu0 0.0
    %420 = vmatpush1.msra.mxu0 0.0
    %421 = vmatprep.subr.mxu0 0.0
    %422 = vmatpush1.msra.mxu0 0.0
    %423 = vmatprep.subr.mxu0 0.0
    %424 = vmatpush1.msra.mxu0 0.0
    %425 = vmatprep.subr.mxu0 0.0
    %426 = vmatpush1.msra.mxu0 0.0
    %427 = vmatprep.subr.mxu0 0.0
    %428 = vmatpush1.msra.mxu0 0.0
    %429 = vmatprep.subr.mxu0 0.0
    %430 = vmatpush1.msra.mxu0 0.0
    %431 = vmatprep.subr.mxu0 0.0
    %432 = vmatpush1.msra.mxu0 0.0
    %433 = vmatprep.subr.mxu0 0.0
    %434 = vmatpush1.msra.mxu0 0.0
    %435 = vmatprep.subr.mxu0 0.0
    %436 = vmatpush1.msra.mxu0 0.0
    %437 = vmatprep.subr.mxu0 0.0
    %438 = vmatpush1.msra.mxu0 0.0
    %439 = vmatprep.subr.mxu0 0.0
    %440 = vmatpush1.msra.mxu0 0.0
    %441 = vmatprep.subr.mxu0 0.0
    %442 = vmatpush1.msra.mxu0 0.0
    %443 = vmatprep.subr.mxu0 0.0
    %444 = vmatpush1.msra.mxu0 0.0
    %445 = vmatprep.subr.mxu0 0.0
    %446 = vmatpush1.msra.mxu0 0.0
    %447 = vmatprep.mubr.f32.mxu0 0.0
    %448 = vmatmul.mubr.f32.gmra.mrb[0].mxu0 %v61
    %v449 = vpop.f32.mrb[0].mxu0
    %v450 = vadd.f32 0.0, %v449
    %v451 = vpop.f32.mrb[0].mxu0
    %452 = vdwg.mxu0
    %s453 = scalar_lea.vmem %s0, 8
    %v454 = vld [vmem:[%s453] sm:$0xff]
    %456 = vset.pattern.permute.xlu0 0
    %457 = vperm.xlu0 %456, %v454
    %v458 = vpop.permute.xlu0 %457
    %v460 = vsub.f32 %v450, %v458
    %v461 = vmul.f32 %v460, %v460
    %462 = vmatprep.subr.mxu0 0.0
    %463 = vmatpush1.msra.mxu0 %v461
    %464 = vmatprep.subr.mxu0 0.0
    %465 = vmatpush1.msra.mxu0 0.0
    %466 = vmatprep.subr.mxu0 0.0
    %467 = vmatpush1.msra.mxu0 0.0
    %468 = vmatprep.subr.mxu0 0.0
    %469 = vmatpush1.msra.mxu0 0.0
    %470 = vmatprep.subr.mxu0 0.0
    %471 = vmatpush1.msra.mxu0 0.0
    %472 = vmatprep.subr.mxu0 0.0
    %473 = vmatpush1.msra.mxu0 0.0
    %474 = vmatprep.subr.mxu0 0.0
    %475 = vmatpush1.msra.mxu0 0.0
    %476 = vmatprep.subr.mxu0 0.0
    %477 = vmatpush1.msra.mxu0 0.0
    %478 = vmatprep.subr.mxu0 0.0
    %479 = vmatpush1.msra.mxu0 0.0
    %480 = vmatprep.subr.mxu0 0.0
    %481 = vmatpush1.msra.mxu0 0.0
    %482 = vmatprep.subr.mxu0 0.0
    %483 = vmatpush1.msra.mxu0 0.0
    %484 = vmatprep.subr.mxu0 0.0
    %485 = vmatpush1.msra.mxu0 0.0
    %486 = vmatprep.subr.mxu0 0.0
    %487 = vmatpush1.msra.mxu0 0.0
    %488 = vmatprep.subr.mxu0 0.0
    %489 = vmatpush1.msra.mxu0 0.0
    %490 = vmatprep.subr.mxu0 0.0
    %491 = vmatpush1.msra.mxu0 0.0
    %492 = vmatprep.subr.mxu0 0.0
    %493 = vmatpush1.msra.mxu0 0.0
    %494 = vmatprep.subr.mxu0 0.0
    %495 = vmatpush1.msra.mxu0 0.0
    %496 = vmatprep.subr.mxu0 0.0
    %497 = vmatpush1.msra.mxu0 0.0
    %498 = vmatprep.subr.mxu0 0.0
    %499 = vmatpush1.msra.mxu0 0.0
    %500 = vmatprep.subr.mxu0 0.0
    %501 = vmatpush1.msra.mxu0 0.0
    %502 = vmatprep.subr.mxu0 0.0
    %503 = vmatpush1.msra.mxu0 0.0
    %504 = vmatprep.subr.mxu0 0.0
    %505 = vmatpush1.msra.mxu0 0.0
    %506 = vmatprep.subr.mxu0 0.0
    %507 = vmatpush1.msra.mxu0 0.0
    %508 = vmatprep.subr.mxu0 0.0
    %509 = vmatpush1.msra.mxu0 0.0
    %510 = vmatprep.subr.mxu0 0.0
    %511 = vmatpush1.msra.mxu0 0.0
    %512 = vmatprep.subr.mxu0 0.0
    %513 = vmatpush1.msra.mxu0 0.0
    %514 = vmatprep.subr.mxu0 0.0
    %515 = vmatpush1.msra.mxu0 0.0
    %516 = vmatprep.subr.mxu0 0.0
    %517 = vmatpush1.msra.mxu0 0.0
    %518 = vmatprep.subr.mxu0 0.0
    %519 = vmatpush1.msra.mxu0 0.0
    %520 = vmatprep.subr.mxu0 0.0
    %521 = vmatpush1.msra.mxu0 0.0
    %522 = vmatprep.subr.mxu0 0.0
    %523 = vmatpush1.msra.mxu0 0.0
    %524 = vmatprep.subr.mxu0 0.0
    %525 = vmatpush1.msra.mxu0 0.0
    %526 = vmatprep.mubr.f32.mxu0 0.0
    %527 = vmatmul.mubr.f32.gmra.mrb[0].mxu0 %v143
    %v528 = vpop.f32.mrb[0].mxu0
    %v529 = vadd.f32 0.0, %v528
    %v530 = vpop.f32.mrb[0].mxu0
    %531 = vdwg.mxu0
    %v532 = vadd.f32 %v212, %v529
    %v533 = vsel %vm215, %v532, -inf
    %534 = vmax.xlane.f32.xlu0 %v533
    %v535 = vpop.xlane.xlu0 %534
    %v536 = vsub.f32 %v532, %v535
    %v537 = vmul.f32 %v536, 1.442695
    %v538 = vpow.pop %v537
    %v539 = vsel %vm215, %v538, 0.0
    %540 = vadd.xlane.f32.xlu0 %v539
    %v541 = vpop.xlane.xlu0 %540
    %542 = vmatprep.subr.mxu0 0.0
    %543 = vmatpush1.xpose.msra.mxu0 %v375
    %544 = vmatprep.subr.mxu0 0.0
    %545 = vmatpush1.xpose.msra.mxu0 %v380
    %546 = vmatprep.subr.mxu0 0.0
    %547 = vmatpush1.xpose.msra.mxu0 0.0
    %548 = vmatprep.subr.mxu0 0.0
    %549 = vmatpush1.xpose.msra.mxu0 0.0
    %550 = vmatprep.subr.mxu0 0.0
    %551 = vmatpush1.xpose.msra.mxu0 0.0
    %552 = vmatprep.subr.mxu0 0.0
    %553 = vmatpush1.xpose.msra.mxu0 0.0
    %554 = vmatprep.subr.mxu0 0.0
    %555 = vmatpush1.xpose.msra.mxu0 0.0
    %556 = vmatprep.subr.mxu0 0.0
    %557 = vmatpush1.xpose.msra.mxu0 0.0
    %558 = vmatprep.subr.mxu0 0.0
    %559 = vmatpush1.xpose.msra.mxu0 0.0
    %560 = vmatprep.subr.mxu0 0.0
    %561 = vmatpush1.xpose.msra.mxu0 0.0
    %562 = vmatprep.subr.mxu0 0.0
    %563 = vmatpush1.xpose.msra.mxu0 0.0
    %564 = vmatprep.subr.mxu0 0.0
    %565 = vmatpush1.xpose.msra.mxu0 0.0
    %566 = vmatprep.subr.mxu0 0.0
    %567 = vmatpush1.xpose.msra.mxu0 0.0
    %568 = vmatprep.subr.mxu0 0.0
    %569 = vmatpush1.xpose.msra.mxu0 0.0
    %570 = vmatprep.subr.mxu0 0.0
    %571 = vmatpush1.xpose.msra.mxu0 0.0
    %572 = vmatprep.subr.mxu0 0.0
    %573 = vmatpush1.xpose.msra.mxu0 0.0
    %574 = vmatprep.subr.mxu0 0.0
    %575 = vmatpush1.xpose.msra.mxu0 0.0
    %576 = vmatprep.subr.mxu0 0.0
    %577 = vmatpush1.xpose.msra.mxu0 0.0
    %578 = vmatprep.subr.mxu0 0.0
    %579 = vmatpush1.xpose.msra.mxu0 0.0
    %580 = vmatprep.subr.mxu0 0.0
    %581 = vmatpush1.xpose.msra.mxu0 0.0
    %582 = vmatprep.subr.mxu0 0.0
    %583 = vmatpush1.xpose.msra.mxu0 0.0
    %584 = vmatprep.subr.mxu0 0.0
    %585 = vmatpush1.xpose.msra.mxu0 0.0
    %586 = vmatprep.subr.mxu0 0.0
    %587 = vmatpush1.xpose.msra.mxu0 0.0
    %588 = vmatprep.subr.mxu0 0.0
    %589 = vmatpush1.xpose.msra.mxu0 0.0
    %590 = vmatprep.subr.mxu0 0.0
    %591 = vmatpush1.xpose.msra.mxu0 0.0
    %592 = vmatprep.subr.mxu0 0.0
    %593 = vmatpush1.xpose.msra.mxu0 0.0
    %594 = vmatprep.subr.mxu0 0.0
    %595 = vmatpush1.xpose.msra.mxu0 0.0
    %596 = vmatprep.subr.mxu0 0.0
    %597 = vmatpush1.xpose.msra.mxu0 0.0
    %598 = vmatprep.subr.mxu0 0.0
    %599 = vmatpush1.xpose.msra.mxu0 0.0
    %600 = vmatprep.subr.mxu0 0.0
    %601 = vmatpush1.xpose.msra.mxu0 0.0
    %602 = vmatprep.subr.mxu0 0.0
    %603 = vmatpush1.xpose.msra.mxu0 0.0
    %604 = vmatprep.subr.mxu0 0.0
    %605 = vmatpush1.xpose.msra.mxu0 0.0
    %606 = vmatprep.mubr.f32.mxu0 0.0
    %607 = vmatmul.mubr.f32.gmra.mrb[0].mxu0 %v538
    %v608 = vpop.f32.mrb[0].mxu0
    %v609 = vadd.f32 0.0, %v608
    %v610 = vpop.f32.mrb[0].mxu0
    %611 = vdwg.mxu0
    %v612 = vrcp.pop %v541
    %v613 = vmul.f32 %v609, %v612
    %615 = vrot.lane.b32.xlu0 %v613, 16
    %v616 = vpop.permute.xlu0 %615
    %vm618 = vcmask 255104
    %619 = vst.msk [vmem:[#allocation5] sm:$0x3] %vm618, %v616
    %s620 = scalar_lea.vmem [#allocation2], 32
    %v621 = vld [vmem:[%s620] sm:$0xff]
    %v622 = vld [vmem:[%s620 + $0x8] sm:$0xff]
    %623 = vmatprep.subr.mxu0 0.0
    %624 = vmatpush1.msra.mxu0 %v375
    %625 = vmatprep.subr.mxu0 0.0
    %626 = vmatpush1.msra.mxu0 %v380
    %627 = vmatprep.subr.mxu0 0.0
    %628 = vmatpush1.msra.mxu0 0.0
    %629 = vmatprep.subr.mxu0 0.0
    %630 = vmatpush1.msra.mxu0 0.0
    %631 = vmatprep.subr.mxu0 0.0
    %632 = vmatpush1.msra.mxu0 0.0
    %633 = vmatprep.subr.mxu0 0.0
    %634 = vmatpush1.msra.mxu0 0.0
    %635 = vmatprep.subr.mxu0 0.0
    %636 = vmatpush1.msra.mxu0 0.0
    %637 = vmatprep.subr.mxu0 0.0
    %638 = vmatpush1.msra.mxu0 0.0
    %639 = vmatprep.subr.mxu0 0.0
    %640 = vmatpush1.msra.mxu0 0.0
    %641 = vmatprep.subr.mxu0 0.0
    %642 = vmatpush1.msra.mxu0 0.0
    %643 = vmatprep.subr.mxu0 0.0
    %644 = vmatpush1.msra.mxu0 0.0
    %645 = vmatprep.subr.mxu0 0.0
    %646 = vmatpush1.msra.mxu0 0.0
    %647 = vmatprep.subr.mxu0 0.0
    %648 = vmatpush1.msra.mxu0 0.0
    %649 = vmatprep.subr.mxu0 0.0
    %650 = vmatpush1.msra.mxu0 0.0
    %651 = vmatprep.subr.mxu0 0.0
    %652 = vmatpush1.msra.mxu0 0.0
    %653 = vmatprep.subr.mxu0 0.0
    %654 = vmatpush1.msra.mxu0 0.0
    %655 = vmatprep.subr.mxu0 0.0
    %656 = vmatpush1.msra.mxu0 0.0
    %657 = vmatprep.subr.mxu0 0.0
    %658 = vmatpush1.msra.mxu0 0.0
    %659 = vmatprep.subr.mxu0 0.0
    %660 = vmatpush1.msra.mxu0 0.0
    %661 = vmatprep.subr.mxu0 0.0
    %662 = vmatpush1.msra.mxu0 0.0
    %663 = vmatprep.subr.mxu0 0.0
    %664 = vmatpush1.msra.mxu0 0.0
    %665 = vmatprep.subr.mxu0 0.0
    %666 = vmatpush1.msra.mxu0 0.0
    %667 = vmatprep.subr.mxu0 0.0
    %668 = vmatpush1.msra.mxu0 0.0
    %669 = vmatprep.subr.mxu0 0.0
    %670 = vmatpush1.msra.mxu0 0.0
    %671 = vmatprep.subr.mxu0 0.0
    %672 = vmatpush1.msra.mxu0 0.0
    %673 = vmatprep.subr.mxu0 0.0
    %674 = vmatpush1.msra.mxu0 0.0
    %675 = vmatprep.subr.mxu0 0.0
    %676 = vmatpush1.msra.mxu0 0.0
    %677 = vmatprep.subr.mxu0 0.0
    %678 = vmatpush1.msra.mxu0 0.0
    %679 = vmatprep.subr.mxu0 0.0
    %680 = vmatpush1.msra.mxu0 0.0
    %681 = vmatprep.subr.mxu0 0.0
    %682 = vmatpush1.msra.mxu0 0.0
    %683 = vmatprep.subr.mxu0 0.0
    %684 = vmatpush1.msra.mxu0 0.0
    %685 = vmatprep.subr.mxu0 0.0
    %686 = vmatpush1.msra.mxu0 0.0
    %687 = vmatprep.mubr.f32.mxu0 0.0
    %688 = vmatmul.mubr.f32.gmra.mrb[0].mxu0 %v303
    %v689 = vpop.f32.mrb[0].mxu0
    %v690 = vadd.f32 %v621, %v689
    %v691 = vpop.f32.mrb[0].mxu0
    %692 = vmatprep.mubr.f32.mxu0 0.0
    %693 = vmatmul.mubr.f32.gmra.mrb[0].mxu0 %v306
    %v694 = vpop.f32.mrb[0].mxu0
    %v695 = vadd.f32 %v622, %v694
    %v696 = vpop.f32.mrb[0].mxu0
    %697 = vdwg.mxu0
    %698 = vmatprep.subr.mxu0 0.0
    %699 = vmatpush1.msra.mxu0 %v690
    %700 = vmatprep.subr.mxu0 0.0
    %701 = vmatpush1.msra.mxu0 %v695
    %702 = vmatprep.subr.mxu0 0.0
    %703 = vmatpush1.msra.mxu0 0.0
    %704 = vmatprep.subr.mxu0 0.0
    %705 = vmatpush1.msra.mxu0 0.0
    %706 = vmatprep.subr.mxu0 0.0
    %707 = vmatpush1.msra.mxu0 0.0
    %708 = vmatprep.subr.mxu0 0.0
    %709 = vmatpush1.msra.mxu0 0.0
    %710 = vmatprep.subr.mxu0 0.0
    %711 = vmatpush1.msra.mxu0 0.0
    %712 = vmatprep.subr.mxu0 0.0
    %713 = vmatpush1.msra.mxu0 0.0
    %714 = vmatprep.subr.mxu0 0.0
    %715 = vmatpush1.msra.mxu0 0.0
    %716 = vmatprep.subr.mxu0 0.0
    %717 = vmatpush1.msra.mxu0 0.0
    %718 = vmatprep.subr.mxu0 0.0
    %719 = vmatpush1.msra.mxu0 0.0
    %720 = vmatprep.subr.mxu0 0.0
    %721 = vmatpush1.msra.mxu0 0.0
    %722 = vmatprep.subr.mxu0 0.0
    %723 = vmatpush1.msra.mxu0 0.0
    %724 = vmatprep.subr.mxu0 0.0
    %725 = vmatpush1.msra.mxu0 0.0
    %726 = vmatprep.subr.mxu0 0.0
    %727 = vmatpush1.msra.mxu0 0.0
    %728 = vmatprep.subr.mxu0 0.0
    %729 = vmatpush1.msra.mxu0 0.0
    %730 = vmatprep.subr.mxu0 0.0
    %731 = vmatpush1.msra.mxu0 0.0
    %732 = vmatprep.subr.mxu0 0.0
    %733 = vmatpush1.msra.mxu0 0.0
    %734 = vmatprep.subr.mxu0 0.0
    %735 = vmatpush1.msra.mxu0 0.0
    %736 = vmatprep.subr.mxu0 0.0
    %737 = vmatpush1.msra.mxu0 0.0
    %738 = vmatprep.subr.mxu0 0.0
    %739 = vmatpush1.msra.mxu0 0.0
    %740 = vmatprep.subr.mxu0 0.0
    %741 = vmatpush1.msra.mxu0 0.0
    %742 = vmatprep.subr.mxu0 0.0
    %743 = vmatpush1.msra.mxu0 0.0
    %744 = vmatprep.subr.mxu0 0.0
    %745 = vmatpush1.msra.mxu0 0.0
    %746 = vmatprep.subr.mxu0 0.0
    %747 = vmatpush1.msra.mxu0 0.0
    %748 = vmatprep.subr.mxu0 0.0
    %749 = vmatpush1.msra.mxu0 0.0
    %750 = vmatprep.subr.mxu0 0.0
    %751 = vmatpush1.msra.mxu0 0.0
    %752 = vmatprep.subr.mxu0 0.0
    %753 = vmatpush1.msra.mxu0 0.0
    %754 = vmatprep.subr.mxu0 0.0
    %755 = vmatpush1.msra.mxu0 0.0
    %756 = vmatprep.subr.mxu0 0.0
    %757 = vmatpush1.msra.mxu0 0.0
    %758 = vmatprep.subr.mxu0 0.0
    %759 = vmatpush1.msra.mxu0 0.0
    %760 = vmatprep.subr.mxu0 0.0
    %761 = vmatpush1.msra.mxu0 0.0
    %762 = vmatprep.mubr.f32.mxu0 0.0
    %763 = vmatmul.mubr.f32.gmra.mrb[0].mxu0 %v61
    %v764 = vpop.f32.mrb[0].mxu0
    %v765 = vadd.f32 0.0, %v764
    %v766 = vpop.f32.mrb[0].mxu0
    %767 = vdwg.mxu0
    %s768 = scalar_lea.vmem %s0, 16
    %v769 = vld [vmem:[%s768] sm:$0xff]
    %771 = vset.pattern.permute.xlu0 0
    %772 = vperm.xlu0 %771, %v769
    %v773 = vpop.permute.xlu0 %772
    %v775 = vsub.f32 %v765, %v773
    %v776 = vmul.f32 %v775, %v775
    %777 = vmatprep.subr.mxu0 0.0
    %778 = vmatpush1.msra.mxu0 %v776
    %779 = vmatprep.subr.mxu0 0.0
    %780 = vmatpush1.msra.mxu0 0.0
    %781 = vmatprep.subr.mxu0 0.0
    %782 = vmatpush1.msra.mxu0 0.0
    %783 = vmatprep.subr.mxu0 0.0
    %784 = vmatpush1.msra.mxu0 0.0
    %785 = vmatprep.subr.mxu0 0.0
    %786 = vmatpush1.msra.mxu0 0.0
    %787 = vmatprep.subr.mxu0 0.0
    %788 = vmatpush1.msra.mxu0 0.0
    %789 = vmatprep.subr.mxu0 0.0
    %790 = vmatpush1.msra.mxu0 0.0
    %791 = vmatprep.subr.mxu0 0.0
    %792 = vmatpush1.msra.mxu0 0.0
    %793 = vmatprep.subr.mxu0 0.0
    %794 = vmatpush1.msra.mxu0 0.0
    %795 = vmatprep.subr.mxu0 0.0
    %796 = vmatpush1.msra.mxu0 0.0
    %797 = vmatprep.subr.mxu0 0.0
    %798 = vmatpush1.msra.mxu0 0.0
    %799 = vmatprep.subr.mxu0 0.0
    %800 = vmatpush1.msra.mxu0 0.0
    %801 = vmatprep.subr.mxu0 0.0
    %802 = vmatpush1.msra.mxu0 0.0
    %803 = vmatprep.subr.mxu0 0.0
    %804 = vmatpush1.msra.mxu0 0.0
    %805 = vmatprep.subr.mxu0 0.0
    %806 = vmatpush1.msra.mxu0 0.0
    %807 = vmatprep.subr.mxu0 0.0
    %808 = vmatpush1.msra.mxu0 0.0
    %809 = vmatprep.subr.mxu0 0.0
    %810 = vmatpush1.msra.mxu0 0.0
    %811 = vmatprep.subr.mxu0 0.0
    %812 = vmatpush1.msra.mxu0 0.0
    %813 = vmatprep.subr.mxu0 0.0
    %814 = vmatpush1.msra.mxu0 0.0
    %815 = vmatprep.subr.mxu0 0.0
    %816 = vmatpush1.msra.mxu0 0.0
    %817 = vmatprep.subr.mxu0 0.0
    %818 = vmatpush1.msra.mxu0 0.0
    %819 = vmatprep.subr.mxu0 0.0
    %820 = vmatpush1.msra.mxu0 0.0
    %821 = vmatprep.subr.mxu0 0.0
    %822 = vmatpush1.msra.mxu0 0.0
    %823 = vmatprep.subr.mxu0 0.0
    %824 = vmatpush1.msra.mxu0 0.0
    %825 = vmatprep.subr.mxu0 0.0
    %826 = vmatpush1.msra.mxu0 0.0
    %827 = vmatprep.subr.mxu0 0.0
    %828 = vmatpush1.msra.mxu0 0.0
    %829 = vmatprep.subr.mxu0 0.0
    %830 = vmatpush1.msra.mxu0 0.0
    %831 = vmatprep.subr.mxu0 0.0
    %832 = vmatpush1.msra.mxu0 0.0
    %833 = vmatprep.subr.mxu0 0.0
    %834 = vmatpush1.msra.mxu0 0.0
    %835 = vmatprep.subr.mxu0 0.0
    %836 = vmatpush1.msra.mxu0 0.0
    %837 = vmatprep.subr.mxu0 0.0
    %838 = vmatpush1.msra.mxu0 0.0
    %839 = vmatprep.subr.mxu0 0.0
    %840 = vmatpush1.msra.mxu0 0.0
    %841 = vmatprep.mubr.f32.mxu0 0.0
    %842 = vmatmul.mubr.f32.gmra.mrb[0].mxu0 %v143
    %v843 = vpop.f32.mrb[0].mxu0
    %v844 = vadd.f32 0.0, %v843
    %v845 = vpop.f32.mrb[0].mxu0
    %846 = vdwg.mxu0
    %v847 = vadd.f32 %v532, %v844
    %v848 = vsel %vm215, %v847, -inf
    %849 = vmax.xlane.f32.xlu0 %v848
    %v850 = vpop.xlane.xlu0 %849
    %v851 = vsub.f32 %v847, %v850
    %v852 = vmul.f32 %v851, 1.442695
    %v853 = vpow.pop %v852
    %v854 = vsel %vm215, %v853, 0.0
    %855 = vadd.xlane.f32.xlu0 %v854
    %v856 = vpop.xlane.xlu0 %855
    %857 = vmatprep.subr.mxu0 0.0
    %858 = vmatpush1.xpose.msra.mxu0 %v690
    %859 = vmatprep.subr.mxu0 0.0
    %860 = vmatpush1.xpose.msra.mxu0 %v695
    %861 = vmatprep.subr.mxu0 0.0
    %862 = vmatpush1.xpose.msra.mxu0 0.0
    %863 = vmatprep.subr.mxu0 0.0
    %864 = vmatpush1.xpose.msra.mxu0 0.0
    %865 = vmatprep.subr.mxu0 0.0
    %866 = vmatpush1.xpose.msra.mxu0 0.0
    %867 = vmatprep.subr.mxu0 0.0
    %868 = vmatpush1.xpose.msra.mxu0 0.0
    %869 = vmatprep.subr.mxu0 0.0
    %870 = vmatpush1.xpose.msra.mxu0 0.0
    %871 = vmatprep.subr.mxu0 0.0
    %872 = vmatpush1.xpose.msra.mxu0 0.0
    %873 = vmatprep.subr.mxu0 0.0
    %874 = vmatpush1.xpose.msra.mxu0 0.0
    %875 = vmatprep.subr.mxu0 0.0
    %876 = vmatpush1.xpose.msra.mxu0 0.0
    %877 = vmatprep.subr.mxu0 0.0
    %878 = vmatpush1.xpose.msra.mxu0 0.0
    %879 = vmatprep.subr.mxu0 0.0
    %880 = vmatpush1.xpose.msra.mxu0 0.0
    %881 = vmatprep.subr.mxu0 0.0
    %882 = vmatpush1.xpose.msra.mxu0 0.0
    %883 = vmatprep.subr.mxu0 0.0
    %884 = vmatpush1.xpose.msra.mxu0 0.0
    %885 = vmatprep.subr.mxu0 0.0
    %886 = vmatpush1.xpose.msra.mxu0 0.0
    %887 = vmatprep.subr.mxu0 0.0
    %888 = vmatpush1.xpose.msra.mxu0 0.0
    %889 = vmatprep.subr.mxu0 0.0
    %890 = vmatpush1.xpose.msra.mxu0 0.0
    %891 = vmatprep.subr.mxu0 0.0
    %892 = vmatpush1.xpose.msra.mxu0 0.0
    %893 = vmatprep.subr.mxu0 0.0
    %894 = vmatpush1.xpose.msra.mxu0 0.0
    %895 = vmatprep.subr.mxu0 0.0
    %896 = vmatpush1.xpose.msra.mxu0 0.0
    %897 = vmatprep.subr.mxu0 0.0
    %898 = vmatpush1.xpose.msra.mxu0 0.0
    %899 = vmatprep.subr.mxu0 0.0
    %900 = vmatpush1.xpose.msra.mxu0 0.0
    %901 = vmatprep.subr.mxu0 0.0
    %902 = vmatpush1.xpose.msra.mxu0 0.0
    %903 = vmatprep.subr.mxu0 0.0
    %904 = vmatpush1.xpose.msra.mxu0 0.0
    %905 = vmatprep.subr.mxu0 0.0
    %906 = vmatpush1.xpose.msra.mxu0 0.0
    %907 = vmatprep.subr.mxu0 0.0
    %908 = vmatpush1.xpose.msra.mxu0 0.0
    %909 = vmatprep.subr.mxu0 0.0
    %910 = vmatpush1.xpose.msra.mxu0 0.0
    %911 = vmatprep.subr.mxu0 0.0
    %912 = vmatpush1.xpose.msra.mxu0 0.0
    %913 = vmatprep.subr.mxu0 0.0
    %914 = vmatpush1.xpose.msra.mxu0 0.0
    %915 = vmatprep.subr.mxu0 0.0
    %916 = vmatpush1.xpose.msra.mxu0 0.0
    %917 = vmatprep.subr.mxu0 0.0
    %918 = vmatpush1.xpose.msra.mxu0 0.0
    %919 = vmatprep.subr.mxu0 0.0
    %920 = vmatpush1.xpose.msra.mxu0 0.0
    %921 = vmatprep.mubr.f32.mxu0 0.0
    %922 = vmatmul.mubr.f32.gmra.mrb[0].mxu0 %v853
    %v923 = vpop.f32.mrb[0].mxu0
    %v924 = vadd.f32 0.0, %v923
    %v925 = vpop.f32.mrb[0].mxu0
    %926 = vdwg.mxu0
    %v927 = vrcp.pop %v856
    %v928 = vmul.f32 %v924, %v927
    %930 = vrot.lane.b32.xlu0 %v928, 32
    %v931 = vpop.permute.xlu0 %930
    %vm933 = vcmask 386304
    %934 = vst.msk [vmem:[#allocation5] sm:$0x3] %vm933, %v931
    %s935 = scalar_lea.vmem [#allocation2], 48
    %v936 = vld [vmem:[%s935] sm:$0xff]
    %v937 = vld [vmem:[%s935 + $0x8] sm:$0xff]
    %938 = vmatprep.subr.mxu0 0.0
    %939 = vmatpush1.msra.mxu0 %v690
    %940 = vmatprep.subr.mxu0 0.0
    %941 = vmatpush1.msra.mxu0 %v695
    %942 = vmatprep.subr.mxu0 0.0
    %943 = vmatpush1.msra.mxu0 0.0
    %944 = vmatprep.subr.mxu0 0.0
    %945 = vmatpush1.msra.mxu0 0.0
    %946 = vmatprep.subr.mxu0 0.0
    %947 = vmatpush1.msra.mxu0 0.0
    %948 = vmatprep.subr.mxu0 0.0
    %949 = vmatpush1.msra.mxu0 0.0
    %950 = vmatprep.subr.mxu0 0.0
    %951 = vmatpush1.msra.mxu0 0.0
    %952 = vmatprep.subr.mxu0 0.0
    %953 = vmatpush1.msra.mxu0 0.0
    %954 = vmatprep.subr.mxu0 0.0
    %955 = vmatpush1.msra.mxu0 0.0
    %956 = vmatprep.subr.mxu0 0.0
    %957 = vmatpush1.msra.mxu0 0.0
    %958 = vmatprep.subr.mxu0 0.0
    %959 = vmatpush1.msra.mxu0 0.0
    %960 = vmatprep.subr.mxu0 0.0
    %961 = vmatpush1.msra.mxu0 0.0
    %962 = vmatprep.subr.mxu0 0.0
    %963 = vmatpush1.msra.mxu0 0.0
    %964 = vmatprep.subr.mxu0 0.0
    %965 = vmatpush1.msra.mxu0 0.0
    %966 = vmatprep.subr.mxu0 0.0
    %967 = vmatpush1.msra.mxu0 0.0
    %968 = vmatprep.subr.mxu0 0.0
    %969 = vmatpush1.msra.mxu0 0.0
    %970 = vmatprep.subr.mxu0 0.0
    %971 = vmatpush1.msra.mxu0 0.0
    %972 = vmatprep.subr.mxu0 0.0
    %973 = vmatpush1.msra.mxu0 0.0
    %974 = vmatprep.subr.mxu0 0.0
    %975 = vmatpush1.msra.mxu0 0.0
    %976 = vmatprep.subr.mxu0 0.0
    %977 = vmatpush1.msra.mxu0 0.0
    %978 = vmatprep.subr.mxu0 0.0
    %979 = vmatpush1.msra.mxu0 0.0
    %980 = vmatprep.subr.mxu0 0.0
    %981 = vmatpush1.msra.mxu0 0.0
    %982 = vmatprep.subr.mxu0 0.0
    %983 = vmatpush1.msra.mxu0 0.0
    %984 = vmatprep.subr.mxu0 0.0
    %985 = vmatpush1.msra.mxu0 0.0
    %986 = vmatprep.subr.mxu0 0.0
    %987 = vmatpush1.msra.mxu0 0.0
    %988 = vmatprep.subr.mxu0 0.0
    %989 = vmatpush1.msra.mxu0 0.0
    %990 = vmatprep.subr.mxu0 0.0
    %991 = vmatpush1.msra.mxu0 0.0
    %992 = vmatprep.subr.mxu0 0.0
    %993 = vmatpush1.msra.mxu0 0.0
    %994 = vmatprep.subr.mxu0 0.0
    %995 = vmatpush1.msra.mxu0 0.0
    %996 = vmatprep.subr.mxu0 0.0
    %997 = vmatpush1.msra.mxu0 0.0
    %998 = vmatprep.subr.mxu0 0.0
    %999 = vmatpush1.msra.mxu0 0.0
    %1000 = vmatprep.subr.mxu0 0.0
    %1001 = vmatpush1.msra.mxu0 0.0
    %1002 = vmatprep.mubr.f32.mxu0 0.0
    %1003 = vmatmul.mubr.f32.gmra.mrb[0].mxu0 %v303
    %v1004 = vpop.f32.mrb[0].mxu0
    %v1005 = vadd.f32 %v936, %v1004
    %v1006 = vpop.f32.mrb[0].mxu0
    %1007 = vmatprep.mubr.f32.mxu0 0.0
    %1008 = vmatmul.mubr.f32.gmra.mrb[0].mxu0 %v306
    %v1009 = vpop.f32.mrb[0].mxu0
    %v1010 = vadd.f32 %v937, %v1009
    %v1011 = vpop.f32.mrb[0].mxu0
    %1012 = vdwg.mxu0
    %1013 = vmatprep.subr.mxu0 0.0
    %1014 = vmatpush1.msra.mxu0 %v1005
    %1015 = vmatprep.subr.mxu0 0.0
    %1016 = vmatpush1.msra.mxu0 %v1010
    %1017 = vmatprep.subr.mxu0 0.0
    %1018 = vmatpush1.msra.mxu0 0.0
    %1019 = vmatprep.subr.mxu0 0.0
    %1020 = vmatpush1.msra.mxu0 0.0
    %1021 = vmatprep.subr.mxu0 0.0
    %1022 = vmatpush1.msra.mxu0 0.0
    %1023 = vmatprep.subr.mxu0 0.0
    %1024 = vmatpush1.msra.mxu0 0.0
    %1025 = vmatprep.subr.mxu0 0.0
    %1026 = vmatpush1.msra.mxu0 0.0
    %1027 = vmatprep.subr.mxu0 0.0
    %1028 = vmatpush1.msra.mxu0 0.0
    %1029 = vmatprep.subr.mxu0 0.0
    %1030 = vmatpush1.msra.mxu0 0.0
    %1031 = vmatprep.subr.mxu0 0.0
    %1032 = vmatpush1.msra.mxu0 0.0
    %1033 = vmatprep.subr.mxu0 0.0
    %1034 = vmatpush1.msra.mxu0 0.0
    %1035 = vmatprep.subr.mxu0 0.0
    %1036 = vmatpush1.msra.mxu0 0.0
    %1037 = vmatprep.subr.mxu0 0.0
    %1038 = vmatpush1.msra.mxu0 0.0
    %1039 = vmatprep.subr.mxu0 0.0
    %1040 = vmatpush1.msra.mxu0 0.0
    %1041 = vmatprep.subr.mxu0 0.0
    %1042 = vmatpush1.msra.mxu0 0.0
    %1043 = vmatprep.subr.mxu0 0.0
    %1044 = vmatpush1.msra.mxu0 0.0
    %1045 = vmatprep.subr.mxu0 0.0
    %1046 = vmatpush1.msra.mxu0 0.0
    %1047 = vmatprep.subr.mxu0 0.0
    %1048 = vmatpush1.msra.mxu0 0.0
    %1049 = vmatprep.subr.mxu0 0.0
    %1050 = vmatpush1.msra.mxu0 0.0
    %1051 = vmatprep.subr.mxu0 0.0
    %1052 = vmatpush1.msra.mxu0 0.0
    %1053 = vmatprep.subr.mxu0 0.0
    %1054 = vmatpush1.msra.mxu0 0.0
    %1055 = vmatprep.subr.mxu0 0.0
    %1056 = vmatpush1.msra.mxu0 0.0
    %1057 = vmatprep.subr.mxu0 0.0
    %1058 = vmatpush1.msra.mxu0 0.0
    %1059 = vmatprep.subr.mxu0 0.0
    %1060 = vmatpush1.msra.mxu0 0.0
    %1061 = vmatprep.subr.mxu0 0.0
    %1062 = vmatpush1.msra.mxu0 0.0
    %1063 = vmatprep.subr.mxu0 0.0
    %1064 = vmatpush1.msra.mxu0 0.0
    %1065 = vmatprep.subr.mxu0 0.0
    %1066 = vmatpush1.msra.mxu0 0.0
    %1067 = vmatprep.subr.mxu0 0.0
    %1068 = vmatpush1.msra.mxu0 0.0
    %1069 = vmatprep.subr.mxu0 0.0
    %1070 = vmatpush1.msra.mxu0 0.0
    %1071 = vmatprep.subr.mxu0 0.0
    %1072 = vmatpush1.msra.mxu0 0.0
    %1073 = vmatprep.subr.mxu0 0.0
    %1074 = vmatpush1.msra.mxu0 0.0
    %1075 = vmatprep.subr.mxu0 0.0
    %1076 = vmatpush1.msra.mxu0 0.0
    %1077 = vmatprep.mubr.f32.mxu0 0.0
    %1078 = vmatmul.mubr.f32.gmra.mrb[0].mxu0 %v61
    %v1079 = vpop.f32.mrb[0].mxu0
    %v1080 = vadd.f32 0.0, %v1079
    %v1081 = vpop.f32.mrb[0].mxu0
    %1082 = vdwg.mxu0
    %s1083 = scalar_lea.vmem %s0, 24
    %v1084 = vld [vmem:[%s1083] sm:$0xff]
    %1086 = vset.pattern.permute.xlu0 0
    %1087 = vperm.xlu0 %1086, %v1084
    %v1088 = vpop.permute.xlu0 %1087
    %v1090 = vsub.f32 %v1080, %v1088
    %v1091 = vmul.f32 %v1090, %v1090
    %1092 = vmatprep.subr.mxu0 0.0
    %1093 = vmatpush1.msra.mxu0 %v1091
    %1094 = vmatprep.subr.mxu0 0.0
    %1095 = vmatpush1.msra.mxu0 0.0
    %1096 = vmatprep.subr.mxu0 0.0
    %1097 = vmatpush1.msra.mxu0 0.0
    %1098 = vmatprep.subr.mxu0 0.0
    %1099 = vmatpush1.msra.mxu0 0.0
    %1100 = vmatprep.subr.mxu0 0.0
    %1101 = vmatpush1.msra.mxu0 0.0
    %1102 = vmatprep.subr.mxu0 0.0
    %1103 = vmatpush1.msra.mxu0 0.0
    %1104 = vmatprep.subr.mxu0 0.0
    %1105 = vmatpush1.msra.mxu0 0.0
    %1106 = vmatprep.subr.mxu0 0.0
    %1107 = vmatpush1.msra.mxu0 0.0
    %1108 = vmatprep.subr.mxu0 0.0
    %1109 = vmatpush1.msra.mxu0 0.0
    %1110 = vmatprep.subr.mxu0 0.0
    %1111 = vmatpush1.msra.mxu0 0.0
    %1112 = vmatprep.subr.mxu0 0.0
    %1113 = vmatpush1.msra.mxu0 0.0
    %1114 = vmatprep.subr.mxu0 0.0
    %1115 = vmatpush1.msra.mxu0 0.0
    %1116 = vmatprep.subr.mxu0 0.0
    %1117 = vmatpush1.msra.mxu0 0.0
    %1118 = vmatprep.subr.mxu0 0.0
    %1119 = vmatpush1.msra.mxu0 0.0
    %1120 = vmatprep.subr.mxu0 0.0
    %1121 = vmatpush1.msra.mxu0 0.0
    %1122 = vmatprep.subr.mxu0 0.0
    %1123 = vmatpush1.msra.mxu0 0.0
    %1124 = vmatprep.subr.mxu0 0.0
    %1125 = vmatpush1.msra.mxu0 0.0
    %1126 = vmatprep.subr.mxu0 0.0
    %1127 = vmatpush1.msra.mxu0 0.0
    %1128 = vmatprep.subr.mxu0 0.0
    %1129 = vmatpush1.msra.mxu0 0.0
    %1130 = vmatprep.subr.mxu0 0.0
    %1131 = vmatpush1.msra.mxu0 0.0
    %1132 = vmatprep.subr.mxu0 0.0
    %1133 = vmatpush1.msra.mxu0 0.0
    %1134 = vmatprep.subr.mxu0 0.0
    %1135 = vmatpush1.msra.mxu0 0.0
    %1136 = vmatprep.subr.mxu0 0.0
    %1137 = vmatpush1.msra.mxu0 0.0
    %1138 = vmatprep.subr.mxu0 0.0
    %1139 = vmatpush1.msra.mxu0 0.0
    %1140 = vmatprep.subr.mxu0 0.0
    %1141 = vmatpush1.msra.mxu0 0.0
    %1142 = vmatprep.subr.mxu0 0.0
    %1143 = vmatpush1.msra.mxu0 0.0
    %1144 = vmatprep.subr.mxu0 0.0
    %1145 = vmatpush1.msra.mxu0 0.0
    %1146 = vmatprep.subr.mxu0 0.0
    %1147 = vmatpush1.msra.mxu0 0.0
    %1148 = vmatprep.subr.mxu0 0.0
    %1149 = vmatpush1.msra.mxu0 0.0
    %1150 = vmatprep.subr.mxu0 0.0
    %1151 = vmatpush1.msra.mxu0 0.0
    %1152 = vmatprep.subr.mxu0 0.0
    %1153 = vmatpush1.msra.mxu0 0.0
    %1154 = vmatprep.subr.mxu0 0.0
    %1155 = vmatpush1.msra.mxu0 0.0
    %1156 = vmatprep.mubr.f32.mxu0 0.0
    %1157 = vmatmul.mubr.f32.gmra.mrb[0].mxu0 %v143
    %v1158 = vpop.f32.mrb[0].mxu0
    %v1159 = vadd.f32 0.0, %v1158
    %v1160 = vpop.f32.mrb[0].mxu0
    %1161 = vdwg.mxu0
    %v1162 = vadd.f32 %v847, %v1159
    %v1163 = vsel %vm215, %v1162, -inf
    %1164 = vmax.xlane.f32.xlu0 %v1163
    %v1165 = vpop.xlane.xlu0 %1164
    %v1166 = vsub.f32 %v1162, %v1165
    %v1167 = vmul.f32 %v1166, 1.442695
    %v1168 = vpow.pop %v1167
    %v1169 = vsel %vm215, %v1168, 0.0
    %1170 = vadd.xlane.f32.xlu0 %v1169
    %v1171 = vpop.xlane.xlu0 %1170
    %1172 = vmatprep.subr.mxu0 0.0
    %1173 = vmatpush1.xpose.msra.mxu0 %v1005
    %1174 = vmatprep.subr.mxu0 0.0
    %1175 = vmatpush1.xpose.msra.mxu0 %v1010
    %1176 = vmatprep.subr.mxu0 0.0
    %1177 = vmatpush1.xpose.msra.mxu0 0.0
    %1178 = vmatprep.subr.mxu0 0.0
    %1179 = vmatpush1.xpose.msra.mxu0 0.0
    %1180 = vmatprep.subr.mxu0 0.0
    %1181 = vmatpush1.xpose.msra.mxu0 0.0
    %1182 = vmatprep.subr.mxu0 0.0
    %1183 = vmatpush1.xpose.msra.mxu0 0.0
    %1184 = vmatprep.subr.mxu0 0.0
    %1185 = vmatpush1.xpose.msra.mxu0 0.0
    %1186 = vmatprep.subr.mxu0 0.0
    %1187 = vmatpush1.xpose.msra.mxu0 0.0
    %1188 = vmatprep.subr.mxu0 0.0
    %1189 = vmatpush1.xpose.msra.mxu0 0.0
    %1190 = vmatprep.subr.mxu0 0.0
    %1191 = vmatpush1.xpose.msra.mxu0 0.0
    %1192 = vmatprep.subr.mxu0 0.0
    %1193 = vmatpush1.xpose.msra.mxu0 0.0
    %1194 = vmatprep.subr.mxu0 0.0
    %1195 = vmatpush1.xpose.msra.mxu0 0.0
    %1196 = vmatprep.subr.mxu0 0.0
    %1197 = vmatpush1.xpose.msra.mxu0 0.0
    %1198 = vmatprep.subr.mxu0 0.0
    %1199 = vmatpush1.xpose.msra.mxu0 0.0
    %1200 = vmatprep.subr.mxu0 0.0
    %1201 = vmatpush1.xpose.msra.mxu0 0.0
    %1202 = vmatprep.subr.mxu0 0.0
    %1203 = vmatpush1.xpose.msra.mxu0 0.0
    %1204 = vmatprep.subr.mxu0 0.0
    %1205 = vmatpush1.xpose.msra.mxu0 0.0
    %1206 = vmatprep.subr.mxu0 0.0
    %1207 = vmatpush1.xpose.msra.mxu0 0.0
    %1208 = vmatprep.subr.mxu0 0.0
    %1209 = vmatpush1.xpose.msra.mxu0 0.0
    %1210 = vmatprep.subr.mxu0 0.0
    %1211 = vmatpush1.xpose.msra.mxu0 0.0
    %1212 = vmatprep.subr.mxu0 0.0
    %1213 = vmatpush1.xpose.msra.mxu0 0.0
    %1214 = vmatprep.subr.mxu0 0.0
    %1215 = vmatpush1.xpose.msra.mxu0 0.0
    %1216 = vmatprep.subr.mxu0 0.0
    %1217 = vmatpush1.xpose.msra.mxu0 0.0
    %1218 = vmatprep.subr.mxu0 0.0
    %1219 = vmatpush1.xpose.msra.mxu0 0.0
    %1220 = vmatprep.subr.mxu0 0.0
    %1221 = vmatpush1.xpose.msra.mxu0 0.0
    %1222 = vmatprep.subr.mxu0 0.0
    %1223 = vmatpush1.xpose.msra.mxu0 0.0
    %1224 = vmatprep.subr.mxu0 0.0
    %1225 = vmatpush1.xpose.msra.mxu0 0.0
    %1226 = vmatprep.subr.mxu0 0.0
    %1227 = vmatpush1.xpose.msra.mxu0 0.0
    %1228 = vmatprep.subr.mxu0 0.0
    %1229 = vmatpush1.xpose.msra.mxu0 0.0
    %1230 = vmatprep.subr.mxu0 0.0
    %1231 = vmatpush1.xpose.msra.mxu0 0.0
    %1232 = vmatprep.subr.mxu0 0.0
    %1233 = vmatpush1.xpose.msra.mxu0 0.0
    %1234 = vmatprep.subr.mxu0 0.0
    %1235 = vmatpush1.xpose.msra.mxu0 0.0
    %1236 = vmatprep.mubr.f32.mxu0 0.0
    %1237 = vmatmul.mubr.f32.gmra.mrb[0].mxu0 %v1168
    %v1238 = vpop.f32.mrb[0].mxu0
    %v1239 = vadd.f32 0.0, %v1238
    %v1240 = vpop.f32.mrb[0].mxu0
    %1241 = vdwg.mxu0
    %v1242 = vrcp.pop %v1171
    %v1243 = vmul.f32 %v1239, %v1242
    %1245 = vrot.lane.b32.xlu0 %v1243, 48
    %v1246 = vpop.permute.xlu0 %1245
    %vm1248 = vcmask 517504
    %1249 = vst.msk [vmem:[#allocation5] sm:$0x3] %vm1248, %v1246
    %s1250 = scalar_lea.vmem [#allocation2], 64
    %v1251 = vld [vmem:[%s1250] sm:$0xff]
    %v1252 = vld [vmem:[%s1250 + $0x8] sm:$0xff]
    %1253 = vmatprep.subr.mxu0 0.0
    %1254 = vmatpush1.msra.mxu0 %v1005
    %1255 = vmatprep.subr.mxu0 0.0
    %1256 = vmatpush1.msra.mxu0 %v1010
    %1257 = vmatprep.subr.mxu0 0.0
    %1258 = vmatpush1.msra.mxu0 0.0
    %1259 = vmatprep.subr.mxu0 0.0
    %1260 = vmatpush1.msra.mxu0 0.0
    %1261 = vmatprep.subr.mxu0 0.0
    %1262 = vmatpush1.msra.mxu0 0.0
    %1263 = vmatprep.subr.mxu0 0.0
    %1264 = vmatpush1.msra.mxu0 0.0
    %1265 = vmatprep.subr.mxu0 0.0
    %1266 = vmatpush1.msra.mxu0 0.0
    %1267 = vmatprep.subr.mxu0 0.0
    %1268 = vmatpush1.msra.mxu0 0.0
    %1269 = vmatprep.subr.mxu0 0.0
    %1270 = vmatpush1.msra.mxu0 0.0
    %1271 = vmatprep.subr.mxu0 0.0
    %1272 = vmatpush1.msra.mxu0 0.0
    %1273 = vmatprep.subr.mxu0 0.0
    %1274 = vmatpush1.msra.mxu0 0.0
    %1275 = vmatprep.subr.mxu0 0.0
    %1276 = vmatpush1.msra.mxu0 0.0
    %1277 = vmatprep.subr.mxu0 0.0
    %1278 = vmatpush1.msra.mxu0 0.0
    %1279 = vmatprep.subr.mxu0 0.0
    %1280 = vmatpush1.msra.mxu0 0.0
    %1281 = vmatprep.subr.mxu0 0.0
    %1282 = vmatpush1.msra.mxu0 0.0
    %1283 = vmatprep.subr.mxu0 0.0
    %1284 = vmatpush1.msra.mxu0 0.0
    %1285 = vmatprep.subr.mxu0 0.0
    %1286 = vmatpush1.msra.mxu0 0.0
    %1287 = vmatprep.subr.mxu0 0.0
    %1288 = vmatpush1.msra.mxu0 0.0
    %1289 = vmatprep.subr.mxu0 0.0
    %1290 = vmatpush1.msra.mxu0 0.0
    %1291 = vmatprep.subr.mxu0 0.0
    %1292 = vmatpush1.msra.mxu0 0.0
    %1293 = vmatprep.subr.mxu0 0.0
    %1294 = vmatpush1.msra.mxu0 0.0
    %1295 = vmatprep.subr.mxu0 0.0
    %1296 = vmatpush1.msra.mxu0 0.0
    %1297 = vmatprep.subr.mxu0 0.0
    %1298 = vmatpush1.msra.mxu0 0.0
    %1299 = vmatprep.subr.mxu0 0.0
    %1300 = vmatpush1.msra.mxu0 0.0
    %1301 = vmatprep.subr.mxu0 0.0
    %1302 = vmatpush1.msra.mxu0 0.0
    %1303 = vmatprep.subr.mxu0 0.0
    %1304 = vmatpush1.msra.mxu0 0.0
    %1305 = vmatprep.subr.mxu0 0.0
    %1306 = vmatpush1.msra.mxu0 0.0
    %1307 = vmatprep.subr.mxu0 0.0
    %1308 = vmatpush1.msra.mxu0 0.0
    %1309 = vmatprep.subr.mxu0 0.0
    %1310 = vmatpush1.msra.mxu0 0.0
    %1311 = vmatprep.subr.mxu0 0.0
    %1312 = vmatpush1.msra.mxu0 0.0
    %1313 = vmatprep.subr.mxu0 0.0
    %1314 = vmatpush1.msra.mxu0 0.0
    %1315 = vmatprep.subr.mxu0 0.0
    %1316 = vmatpush1.msra.mxu0 0.0
    %1317 = vmatprep.mubr.f32.mxu0 0.0
    %1318 = vmatmul.mubr.f32.gmra.mrb[0].mxu0 %v303
    %v1319 = vpop.f32.mrb[0].mxu0
    %v1320 = vadd.f32 %v1251, %v1319
    %v1321 = vpop.f32.mrb[0].mxu0
    %1322 = vmatprep.mubr.f32.mxu0 0.0
    %1323 = vmatmul.mubr.f32.gmra.mrb[0].mxu0 %v306
    %v1324 = vpop.f32.mrb[0].mxu0
    %v1325 = vadd.f32 %v1252, %v1324
    %v1326 = vpop.f32.mrb[0].mxu0
    %1327 = vdwg.mxu0
    %1328 = vmatprep.subr.mxu0 0.0
    %1329 = vmatpush1.msra.mxu0 %v1320
    %1330 = vmatprep.subr.mxu0 0.0
    %1331 = vmatpush1.msra.mxu0 %v1325
    %1332 = vmatprep.subr.mxu0 0.0
    %1333 = vmatpush1.msra.mxu0 0.0
    %1334 = vmatprep.subr.mxu0 0.0
    %1335 = vmatpush1.msra.mxu0 0.0
    %1336 = vmatprep.subr.mxu0 0.0
    %1337 = vmatpush1.msra.mxu0 0.0
    %1338 = vmatprep.subr.mxu0 0.0
    %1339 = vmatpush1.msra.mxu0 0.0
    %1340 = vmatprep.subr.mxu0 0.0
    %1341 = vmatpush1.msra.mxu0 0.0
    %1342 = vmatprep.subr.mxu0 0.0
    %1343 = vmatpush1.msra.mxu0 0.0
    %1344 = vmatprep.subr.mxu0 0.0
    %1345 = vmatpush1.msra.mxu0 0.0
    %1346 = vmatprep.subr.mxu0 0.0
    %1347 = vmatpush1.msra.mxu0 0.0
    %1348 = vmatprep.subr.mxu0 0.0
    %1349 = vmatpush1.msra.mxu0 0.0
    %1350 = vmatprep.subr.mxu0 0.0
    %1351 = vmatpush1.msra.mxu0 0.0
    %1352 = vmatprep.subr.mxu0 0.0
    %1353 = vmatpush1.msra.mxu0 0.0
    %1354 = vmatprep.subr.mxu0 0.0
    %1355 = vmatpush1.msra.mxu0 0.0
    %1356 = vmatprep.subr.mxu0 0.0
    %1357 = vmatpush1.msra.mxu0 0.0
    %1358 = vmatprep.subr.mxu0 0.0
    %1359 = vmatpush1.msra.mxu0 0.0
    %1360 = vmatprep.subr.mxu0 0.0
    %1361 = vmatpush1.msra.mxu0 0.0
    %1362 = vmatprep.subr.mxu0 0.0
    %1363 = vmatpush1.msra.mxu0 0.0
    %1364 = vmatprep.subr.mxu0 0.0
    %1365 = vmatpush1.msra.mxu0 0.0
    %1366 = vmatprep.subr.mxu0 0.0
    %1367 = vmatpush1.msra.mxu0 0.0
    %1368 = vmatprep.subr.mxu0 0.0
    %1369 = vmatpush1.msra.mxu0 0.0
    %1370 = vmatprep.subr.mxu0 0.0
    %1371 = vmatpush1.msra.mxu0 0.0
    %1372 = vmatprep.subr.mxu0 0.0
    %1373 = vmatpush1.msra.mxu0 0.0
    %1374 = vmatprep.subr.mxu0 0.0
    %1375 = vmatpush1.msra.mxu0 0.0
    %1376 = vmatprep.subr.mxu0 0.0
    %1377 = vmatpush1.msra.mxu0 0.0
    %1378 = vmatprep.subr.mxu0 0.0
    %1379 = vmatpush1.msra.mxu0 0.0
    %1380 = vmatprep.subr.mxu0 0.0
    %1381 = vmatpush1.msra.mxu0 0.0
    %1382 = vmatprep.subr.mxu0 0.0
    %1383 = vmatpush1.msra.mxu0 0.0
    %1384 = vmatprep.subr.mxu0 0.0
    %1385 = vmatpush1.msra.mxu0 0.0
    %1386 = vmatprep.subr.mxu0 0.0
    %1387 = vmatpush1.msra.mxu0 0.0
    %1388 = vmatprep.subr.mxu0 0.0
    %1389 = vmatpush1.msra.mxu0 0.0
    %1390 = vmatprep.subr.mxu0 0.0
    %1391 = vmatpush1.msra.mxu0 0.0
    %1392 = vmatprep.mubr.f32.mxu0 0.0
    %1393 = vmatmul.mubr.f32.gmra.mrb[0].mxu0 %v61
    %v1394 = vpop.f32.mrb[0].mxu0
    %v1395 = vadd.f32 0.0, %v1394
    %v1396 = vpop.f32.mrb[0].mxu0
    %1397 = vdwg.mxu0
    %s1398 = scalar_lea.vmem %s0, 32
    %v1399 = vld [vmem:[%s1398] sm:$0xff]
    %1401 = vset.pattern.permute.xlu0 0
    %1402 = vperm.xlu0 %1401, %v1399
    %v1403 = vpop.permute.xlu0 %1402
    %v1405 = vsub.f32 %v1395, %v1403
    %v1406 = vmul.f32 %v1405, %v1405
    %1407 = vmatprep.subr.mxu0 0.0
    %1408 = vmatpush1.msra.mxu0 %v1406
    %1409 = vmatprep.subr.mxu0 0.0
    %1410 = vmatpush1.msra.mxu0 0.0
    %1411 = vmatprep.subr.mxu0 0.0
    %1412 = vmatpush1.msra.mxu0 0.0
    %1413 = vmatprep.subr.mxu0 0.0
    %1414 = vmatpush1.msra.mxu0 0.0
    %1415 = vmatprep.subr.mxu0 0.0
    %1416 = vmatpush1.msra.mxu0 0.0
    %1417 = vmatprep.subr.mxu0 0.0
    %1418 = vmatpush1.msra.mxu0 0.0
    %1419 = vmatprep.subr.mxu0 0.0
    %1420 = vmatpush1.msra.mxu0 0.0
    %1421 = vmatprep.subr.mxu0 0.0
    %1422 = vmatpush1.msra.mxu0 0.0
    %1423 = vmatprep.subr.mxu0 0.0
    %1424 = vmatpush1.msra.mxu0 0.0
    %1425 = vmatprep.subr.mxu0 0.0
    %1426 = vmatpush1.msra.mxu0 0.0
    %1427 = vmatprep.subr.mxu0 0.0
    %1428 = vmatpush1.msra.mxu0 0.0
    %1429 = vmatprep.subr.mxu0 0.0
    %1430 = vmatpush1.msra.mxu0 0.0
    %1431 = vmatprep.subr.mxu0 0.0
    %1432 = vmatpush1.msra.mxu0 0.0
    %1433 = vmatprep.subr.mxu0 0.0
    %1434 = vmatpush1.msra.mxu0 0.0
    %1435 = vmatprep.subr.mxu0 0.0
    %1436 = vmatpush1.msra.mxu0 0.0
    %1437 = vmatprep.subr.mxu0 0.0
    %1438 = vmatpush1.msra.mxu0 0.0
    %1439 = vmatprep.subr.mxu0 0.0
    %1440 = vmatpush1.msra.mxu0 0.0
    %1441 = vmatprep.subr.mxu0 0.0
    %1442 = vmatpush1.msra.mxu0 0.0
    %1443 = vmatprep.subr.mxu0 0.0
    %1444 = vmatpush1.msra.mxu0 0.0
    %1445 = vmatprep.subr.mxu0 0.0
    %1446 = vmatpush1.msra.mxu0 0.0
    %1447 = vmatprep.subr.mxu0 0.0
    %1448 = vmatpush1.msra.mxu0 0.0
    %1449 = vmatprep.subr.mxu0 0.0
    %1450 = vmatpush1.msra.mxu0 0.0
    %1451 = vmatprep.subr.mxu0 0.0
    %1452 = vmatpush1.msra.mxu0 0.0
    %1453 = vmatprep.subr.mxu0 0.0
    %1454 = vmatpush1.msra.mxu0 0.0
    %1455 = vmatprep.subr.mxu0 0.0
    %1456 = vmatpush1.msra.mxu0 0.0
    %1457 = vmatprep.subr.mxu0 0.0
    %1458 = vmatpush1.msra.mxu0 0.0
    %1459 = vmatprep.subr.mxu0 0.0
    %1460 = vmatpush1.msra.mxu0 0.0
    %1461 = vmatprep.subr.mxu0 0.0
    %1462 = vmatpush1.msra.mxu0 0.0
    %1463 = vmatprep.subr.mxu0 0.0
    %1464 = vmatpush1.msra.mxu0 0.0
    %1465 = vmatprep.subr.mxu0 0.0
    %1466 = vmatpush1.msra.mxu0 0.0
    %1467 = vmatprep.subr.mxu0 0.0
    %1468 = vmatpush1.msra.mxu0 0.0
    %1469 = vmatprep.subr.mxu0 0.0
    %1470 = vmatpush1.msra.mxu0 0.0
    %1471 = vmatprep.mubr.f32.mxu0 0.0
    %1472 = vmatmul.mubr.f32.gmra.mrb[0].mxu0 %v143
    %v1473 = vpop.f32.mrb[0].mxu0
    %v1474 = vadd.f32 0.0, %v1473
    %v1475 = vpop.f32.mrb[0].mxu0
    %1476 = vdwg.mxu0
    %v1477 = vadd.f32 %v1162, %v1474
    %v1478 = vsel %vm215, %v1477, -inf
    %1479 = vmax.xlane.f32.xlu0 %v1478
    %v1480 = vpop.xlane.xlu0 %1479
    %v1481 = vsub.f32 %v1477, %v1480
    %v1482 = vmul.f32 %v1481, 1.442695
    %v1483 = vpow.pop %v1482
    %v1484 = vsel %vm215, %v1483, 0.0
    %1485 = vadd.xlane.f32.xlu0 %v1484
    %v1486 = vpop.xlane.xlu0 %1485
    %1487 = vmatprep.subr.mxu0 0.0
    %1488 = vmatpush1.xpose.msra.mxu0 %v1320
    %1489 = vmatprep.subr.mxu0 0.0
    %1490 = vmatpush1.xpose.msra.mxu0 %v1325
    %1491 = vmatprep.subr.mxu0 0.0
    %1492 = vmatpush1.xpose.msra.mxu0 0.0
    %1493 = vmatprep.subr.mxu0 0.0
    %1494 = vmatpush1.xpose.msra.mxu0 0.0
    %1495 = vmatprep.subr.mxu0 0.0
    %1496 = vmatpush1.xpose.msra.mxu0 0.0
    %1497 = vmatprep.subr.mxu0 0.0
    %1498 = vmatpush1.xpose.msra.mxu0 0.0
    %1499 = vmatprep.subr.mxu0 0.0
    %1500 = vmatpush1.xpose.msra.mxu0 0.0
    %1501 = vmatprep.subr.mxu0 0.0
    %1502 = vmatpush1.xpose.msra.mxu0 0.0
    %1503 = vmatprep.subr.mxu0 0.0
    %1504 = vmatpush1.xpose.msra.mxu0 0.0
    %1505 = vmatprep.subr.mxu0 0.0
    %1506 = vmatpush1.xpose.msra.mxu0 0.0
    %1507 = vmatprep.subr.mxu0 0.0
    %1508 = vmatpush1.xpose.msra.mxu0 0.0
    %1509 = vmatprep.subr.mxu0 0.0
    %1510 = vmatpush1.xpose.msra.mxu0 0.0
    %1511 = vmatprep.subr.mxu0 0.0
    %1512 = vmatpush1.xpose.msra.mxu0 0.0
    %1513 = vmatprep.subr.mxu0 0.0
    %1514 = vmatpush1.xpose.msra.mxu0 0.0
    %1515 = vmatprep.subr.mxu0 0.0
    %1516 = vmatpush1.xpose.msra.mxu0 0.0
    %1517 = vmatprep.subr.mxu0 0.0
    %1518 = vmatpush1.xpose.msra.mxu0 0.0
    %1519 = vmatprep.subr.mxu0 0.0
    %1520 = vmatpush1.xpose.msra.mxu0 0.0
    %1521 = vmatprep.subr.mxu0 0.0
    %1522 = vmatpush1.xpose.msra.mxu0 0.0
    %1523 = vmatprep.subr.mxu0 0.0
    %1524 = vmatpush1.xpose.msra.mxu0 0.0
    %1525 = vmatprep.subr.mxu0 0.0
    %1526 = vmatpush1.xpose.msra.mxu0 0.0
    %1527 = vmatprep.subr.mxu0 0.0
    %1528 = vmatpush1.xpose.msra.mxu0 0.0
    %1529 = vmatprep.subr.mxu0 0.0
    %1530 = vmatpush1.xpose.msra.mxu0 0.0
    %1531 = vmatprep.subr.mxu0 0.0
    %1532 = vmatpush1.xpose.msra.mxu0 0.0
    %1533 = vmatprep.subr.mxu0 0.0
    %1534 = vmatpush1.xpose.msra.mxu0 0.0
    %1535 = vmatprep.subr.mxu0 0.0
    %1536 = vmatpush1.xpose.msra.mxu0 0.0
    %1537 = vmatprep.subr.mxu0 0.0
    %1538 = vmatpush1.xpose.msra.mxu0 0.0
    %1539 = vmatprep.subr.mxu0 0.0
    %1540 = vmatpush1.xpose.msra.mxu0 0.0
    %1541 = vmatprep.subr.mxu0 0.0
    %1542 = vmatpush1.xpose.msra.mxu0 0.0
    %1543 = vmatprep.subr.mxu0 0.0
    %1544 = vmatpush1.xpose.msra.mxu0 0.0
    %1545 = vmatprep.subr.mxu0 0.0
    %1546 = vmatpush1.xpose.msra.mxu0 0.0
    %1547 = vmatprep.subr.mxu0 0.0
    %1548 = vmatpush1.xpose.msra.mxu0 0.0
    %1549 = vmatprep.subr.mxu0 0.0
    %1550 = vmatpush1.xpose.msra.mxu0 0.0
    %1551 = vmatprep.mubr.f32.mxu0 0.0
    %1552 = vmatmul.mubr.f32.gmra.mrb[0].mxu0 %v1483
    %v1553 = vpop.f32.mrb[0].mxu0
    %v1554 = vadd.f32 0.0, %v1553
    %v1555 = vpop.f32.mrb[0].mxu0
    %1556 = vdwg.mxu0
    %v1557 = vrcp.pop %v1486
    %v1558 = vmul.f32 %v1554, %v1557
    %1560 = vrot.lane.b32.xlu0 %v1558, 64
    %v1561 = vpop.permute.xlu0 %1560
    %vm1563 = vcmask 648704
    %1564 = vst.msk [vmem:[#allocation5] sm:$0x3] %vm1563, %v1561
    %s1565 = scalar_lea.vmem [#allocation2], 80
    %v1566 = vld [vmem:[%s1565] sm:$0xff]
    %v1567 = vld [vmem:[%s1565 + $0x8] sm:$0xff]
    %1568 = vmatprep.subr.mxu0 0.0
    %1569 = vmatpush1.msra.mxu0 %v1320
    %1570 = vmatprep.subr.mxu0 0.0
    %1571 = vmatpush1.msra.mxu0 %v1325
    %1572 = vmatprep.subr.mxu0 0.0
    %1573 = vmatpush1.msra.mxu0 0.0
    %1574 = vmatprep.subr.mxu0 0.0
    %1575 = vmatpush1.msra.mxu0 0.0
    %1576 = vmatprep.subr.mxu0 0.0
    %1577 = vmatpush1.msra.mxu0 0.0
    %1578 = vmatprep.subr.mxu0 0.0
    %1579 = vmatpush1.msra.mxu0 0.0
    %1580 = vmatprep.subr.mxu0 0.0
    %1581 = vmatpush1.msra.mxu0 0.0
    %1582 = vmatprep.subr.mxu0 0.0
    %1583 = vmatpush1.msra.mxu0 0.0
    %1584 = vmatprep.subr.mxu0 0.0
    %1585 = vmatpush1.msra.mxu0 0.0
    %1586 = vmatprep.subr.mxu0 0.0
    %1587 = vmatpush1.msra.mxu0 0.0
    %1588 = vmatprep.subr.mxu0 0.0
    %1589 = vmatpush1.msra.mxu0 0.0
    %1590 = vmatprep.subr.mxu0 0.0
    %1591 = vmatpush1.msra.mxu0 0.0
    %1592 = vmatprep.subr.mxu0 0.0
    %1593 = vmatpush1.msra.mxu0 0.0
    %1594 = vmatprep.subr.mxu0 0.0
    %1595 = vmatpush1.msra.mxu0 0.0
    %1596 = vmatprep.subr.mxu0 0.0
    %1597 = vmatpush1.msra.mxu0 0.0
    %1598 = vmatprep.subr.mxu0 0.0
    %1599 = vmatpush1.msra.mxu0 0.0
    %1600 = vmatprep.subr.mxu0 0.0
    %1601 = vmatpush1.msra.mxu0 0.0
    %1602 = vmatprep.subr.mxu0 0.0
    %1603 = vmatpush1.msra.mxu0 0.0
    %1604 = vmatprep.subr.mxu0 0.0
    %1605 = vmatpush1.msra.mxu0 0.0
    %1606 = vmatprep.subr.mxu0 0.0
    %1607 = vmatpush1.msra.mxu0 0.0
    %1608 = vmatprep.subr.mxu0 0.0
    %1609 = vmatpush1.msra.mxu0 0.0
    %1610 = vmatprep.subr.mxu0 0.0
    %1611 = vmatpush1.msra.mxu0 0.0
    %1612 = vmatprep.subr.mxu0 0.0
    %1613 = vmatpush1.msra.mxu0 0.0
    %1614 = vmatprep.subr.mxu0 0.0
    %1615 = vmatpush1.msra.mxu0 0.0
    %1616 = vmatprep.subr.mxu0 0.0
    %1617 = vmatpush1.msra.mxu0 0.0
    %1618 = vmatprep.subr.mxu0 0.0
    %1619 = vmatpush1.msra.mxu0 0.0
    %1620 = vmatprep.subr.mxu0 0.0
    %1621 = vmatpush1.msra.mxu0 0.0
    %1622 = vmatprep.subr.mxu0 0.0
    %1623 = vmatpush1.msra.mxu0 0.0
    %1624 = vmatprep.subr.mxu0 0.0
    %1625 = vmatpush1.msra.mxu0 0.0
    %1626 = vmatprep.subr.mxu0 0.0
    %1627 = vmatpush1.msra.mxu0 0.0
    %1628 = vmatprep.subr.mxu0 0.0
    %1629 = vmatpush1.msra.mxu0 0.0
    %1630 = vmatprep.subr.mxu0 0.0
    %1631 = vmatpush1.msra.mxu0 0.0
    %1632 = vmatprep.mubr.f32.mxu0 0.0
    %1633 = vmatmul.mubr.f32.gmra.mrb[0].mxu0 %v303
    %v1634 = vpop.f32.mrb[0].mxu0
    %v1635 = vadd.f32 %v1566, %v1634
    %v1636 = vpop.f32.mrb[0].mxu0
    %1637 = vmatprep.mubr.f32.mxu0 0.0
    %1638 = vmatmul.mubr.f32.gmra.mrb[0].mxu0 %v306
    %v1639 = vpop.f32.mrb[0].mxu0
    %v1640 = vadd.f32 %v1567, %v1639
    %v1641 = vpop.f32.mrb[0].mxu0
    %1642 = vdwg.mxu0
    %1643 = vmatprep.subr.mxu0 0.0
    %1644 = vmatpush1.msra.mxu0 %v1635
    %1645 = vmatprep.subr.mxu0 0.0
    %1646 = vmatpush1.msra.mxu0 %v1640
    %1647 = vmatprep.subr.mxu0 0.0
    %1648 = vmatpush1.msra.mxu0 0.0
    %1649 = vmatprep.subr.mxu0 0.0
    %1650 = vmatpush1.msra.mxu0 0.0
    %1651 = vmatprep.subr.mxu0 0.0
    %1652 = vmatpush1.msra.mxu0 0.0
    %1653 = vmatprep.subr.mxu0 0.0
    %1654 = vmatpush1.msra.mxu0 0.0
    %1655 = vmatprep.subr.mxu0 0.0
    %1656 = vmatpush1.msra.mxu0 0.0
    %1657 = vmatprep.subr.mxu0 0.0
    %1658 = vmatpush1.msra.mxu0 0.0
    %1659 = vmatprep.subr.mxu0 0.0
    %1660 = vmatpush1.msra.mxu0 0.0
    %1661 = vmatprep.subr.mxu0 0.0
    %1662 = vmatpush1.msra.mxu0 0.0
    %1663 = vmatprep.subr.mxu0 0.0
    %1664 = vmatpush1.msra.mxu0 0.0
    %1665 = vmatprep.subr.mxu0 0.0
    %1666 = vmatpush1.msra.mxu0 0.0
    %1667 = vmatprep.subr.mxu0 0.0
    %1668 = vmatpush1.msra.mxu0 0.0
    %1669 = vmatprep.subr.mxu0 0.0
    %1670 = vmatpush1.msra.mxu0 0.0
    %1671 = vmatprep.subr.mxu0 0.0
    %1672 = vmatpush1.msra.mxu0 0.0
    %1673 = vmatprep.subr.mxu0 0.0
    %1674 = vmatpush1.msra.mxu0 0.0
    %1675 = vmatprep.subr.mxu0 0.0
    %1676 = vmatpush1.msra.mxu0 0.0
    %1677 = vmatprep.subr.mxu0 0.0
    %1678 = vmatpush1.msra.mxu0 0.0
    %1679 = vmatprep.subr.mxu0 0.0
    %1680 = vmatpush1.msra.mxu0 0.0
    %1681 = vmatprep.subr.mxu0 0.0
    %1682 = vmatpush1.msra.mxu0 0.0
    %1683 = vmatprep.subr.mxu0 0.0
    %1684 = vmatpush1.msra.mxu0 0.0
    %1685 = vmatprep.subr.mxu0 0.0
    %1686 = vmatpush1.msra.mxu0 0.0
    %1687 = vmatprep.subr.mxu0 0.0
    %1688 = vmatpush1.msra.mxu0 0.0
    %1689 = vmatprep.subr.mxu0 0.0
    %1690 = vmatpush1.msra.mxu0 0.0
    %1691 = vmatprep.subr.mxu0 0.0
    %1692 = vmatpush1.msra.mxu0 0.0
    %1693 = vmatprep.subr.mxu0 0.0
    %1694 = vmatpush1.msra.mxu0 0.0
    %1695 = vmatprep.subr.mxu0 0.0
    %1696 = vmatpush1.msra.mxu0 0.0
    %1697 = vmatprep.subr.mxu0 0.0
    %1698 = vmatpush1.msra.mxu0 0.0
    %1699 = vmatprep.subr.mxu0 0.0
    %1700 = vmatpush1.msra.mxu0 0.0
    %1701 = vmatprep.subr.mxu0 0.0
    %1702 = vmatpush1.msra.mxu0 0.0
    %1703 = vmatprep.subr.mxu0 0.0
    %1704 = vmatpush1.msra.mxu0 0.0
    %1705 = vmatprep.subr.mxu0 0.0
    %1706 = vmatpush1.msra.mxu0 0.0
    %1707 = vmatprep.mubr.f32.mxu0 0.0
    %1708 = vmatmul.mubr.f32.gmra.mrb[0].mxu0 %v61
    %v1709 = vpop.f32.mrb[0].mxu0
    %v1710 = vadd.f32 0.0, %v1709
    %v1711 = vpop.f32.mrb[0].mxu0
    %1712 = vdwg.mxu0
    %s1713 = scalar_lea.vmem %s0, 40
    %v1714 = vld [vmem:[%s1713] sm:$0xff]
    %1716 = vset.pattern.permute.xlu0 0
    %1717 = vperm.xlu0 %1716, %v1714
    %v1718 = vpop.permute.xlu0 %1717
    %v1720 = vsub.f32 %v1710, %v1718
    %v1721 = vmul.f32 %v1720, %v1720
    %1722 = vmatprep.subr.mxu0 0.0
    %1723 = vmatpush1.msra.mxu0 %v1721
    %1724 = vmatprep.subr.mxu0 0.0
    %1725 = vmatpush1.msra.mxu0 0.0
    %1726 = vmatprep.subr.mxu0 0.0
    %1727 = vmatpush1.msra.mxu0 0.0
    %1728 = vmatprep.subr.mxu0 0.0
    %1729 = vmatpush1.msra.mxu0 0.0
    %1730 = vmatprep.subr.mxu0 0.0
    %1731 = vmatpush1.msra.mxu0 0.0
    %1732 = vmatprep.subr.mxu0 0.0
    %1733 = vmatpush1.msra.mxu0 0.0
    %1734 = vmatprep.subr.mxu0 0.0
    %1735 = vmatpush1.msra.mxu0 0.0
    %1736 = vmatprep.subr.mxu0 0.0
    %1737 = vmatpush1.msra.mxu0 0.0
    %1738 = vmatprep.subr.mxu0 0.0
    %1739 = vmatpush1.msra.mxu0 0.0
    %1740 = vmatprep.subr.mxu0 0.0
    %1741 = vmatpush1.msra.mxu0 0.0
    %1742 = vmatprep.subr.mxu0 0.0
    %1743 = vmatpush1.msra.mxu0 0.0
    %1744 = vmatprep.subr.mxu0 0.0
    %1745 = vmatpush1.msra.mxu0 0.0
    %1746 = vmatprep.subr.mxu0 0.0
    %1747 = vmatpush1.msra.mxu0 0.0
    %1748 = vmatprep.subr.mxu0 0.0
    %1749 = vmatpush1.msra.mxu0 0.0
    %1750 = vmatprep.subr.mxu0 0.0
    %1751 = vmatpush1.msra.mxu0 0.0
    %1752 = vmatprep.subr.mxu0 0.0
    %1753 = vmatpush1.msra.mxu0 0.0
    %1754 = vmatprep.subr.mxu0 0.0
    %1755 = vmatpush1.msra.mxu0 0.0
    %1756 = vmatprep.subr.mxu0 0.0
    %1757 = vmatpush1.msra.mxu0 0.0
    %1758 = vmatprep.subr.mxu0 0.0
    %1759 = vmatpush1.msra.mxu0 0.0
    %1760 = vmatprep.subr.mxu0 0.0
    %1761 = vmatpush1.msra.mxu0 0.0
    %1762 = vmatprep.subr.mxu0 0.0
    %1763 = vmatpush1.msra.mxu0 0.0
    %1764 = vmatprep.subr.mxu0 0.0
    %1765 = vmatpush1.msra.mxu0 0.0
    %1766 = vmatprep.subr.mxu0 0.0
    %1767 = vmatpush1.msra.mxu0 0.0
    %1768 = vmatprep.subr.mxu0 0.0
    %1769 = vmatpush1.msra.mxu0 0.0
    %1770 = vmatprep.subr.mxu0 0.0
    %1771 = vmatpush1.msra.mxu0 0.0
    %1772 = vmatprep.subr.mxu0 0.0
    %1773 = vmatpush1.msra.mxu0 0.0
    %1774 = vmatprep.subr.mxu0 0.0
    %1775 = vmatpush1.msra.mxu0 0.0
    %1776 = vmatprep.subr.mxu0 0.0
    %1777 = vmatpush1.msra.mxu0 0.0
    %1778 = vmatprep.subr.mxu0 0.0
    %1779 = vmatpush1.msra.mxu0 0.0
    %1780 = vmatprep.subr.mxu0 0.0
    %1781 = vmatpush1.msra.mxu0 0.0
    %1782 = vmatprep.subr.mxu0 0.0
    %1783 = vmatpush1.msra.mxu0 0.0
    %1784 = vmatprep.subr.mxu0 0.0
    %1785 = vmatpush1.msra.mxu0 0.0
    %1786 = vmatprep.mubr.f32.mxu0 0.0
    %1787 = vmatmul.mubr.f32.gmra.mrb[0].mxu0 %v143
    %v1788 = vpop.f32.mrb[0].mxu0
    %v1789 = vadd.f32 0.0, %v1788
    %v1790 = vpop.f32.mrb[0].mxu0
    %1791 = vdwg.mxu0
    %v1792 = vadd.f32 %v1477, %v1789
    %v1793 = vsel %vm215, %v1792, -inf
    %1794 = vmax.xlane.f32.xlu0 %v1793
    %v1795 = vpop.xlane.xlu0 %1794
    %v1796 = vsub.f32 %v1792, %v1795
    %v1797 = vmul.f32 %v1796, 1.442695
    %v1798 = vpow.pop %v1797
    %v1799 = vsel %vm215, %v1798, 0.0
    %1800 = vadd.xlane.f32.xlu0 %v1799
    %v1801 = vpop.xlane.xlu0 %1800
    %1802 = vmatprep.subr.mxu0 0.0
    %1803 = vmatpush1.xpose.msra.mxu0 %v1635
    %1804 = vmatprep.subr.mxu0 0.0
    %1805 = vmatpush1.xpose.msra.mxu0 %v1640
    %1806 = vmatprep.subr.mxu0 0.0
    %1807 = vmatpush1.xpose.msra.mxu0 0.0
    %1808 = vmatprep.subr.mxu0 0.0
    %1809 = vmatpush1.xpose.msra.mxu0 0.0
    %1810 = vmatprep.subr.mxu0 0.0
    %1811 = vmatpush1.xpose.msra.mxu0 0.0
    %1812 = vmatprep.subr.mxu0 0.0
    %1813 = vmatpush1.xpose.msra.mxu0 0.0
    %1814 = vmatprep.subr.mxu0 0.0
    %1815 = vmatpush1.xpose.msra.mxu0 0.0
    %1816 = vmatprep.subr.mxu0 0.0
    %1817 = vmatpush1.xpose.msra.mxu0 0.0
    %1818 = vmatprep.subr.mxu0 0.0
    %1819 = vmatpush1.xpose.msra.mxu0 0.0
    %1820 = vmatprep.subr.mxu0 0.0
    %1821 = vmatpush1.xpose.msra.mxu0 0.0
    %1822 = vmatprep.subr.mxu0 0.0
    %1823 = vmatpush1.xpose.msra.mxu0 0.0
    %1824 = vmatprep.subr.mxu0 0.0
    %1825 = vmatpush1.xpose.msra.mxu0 0.0
    %1826 = vmatprep.subr.mxu0 0.0
    %1827 = vmatpush1.xpose.msra.mxu0 0.0
    %1828 = vmatprep.subr.mxu0 0.0
    %1829 = vmatpush1.xpose.msra.mxu0 0.0
    %1830 = vmatprep.subr.mxu0 0.0
    %1831 = vmatpush1.xpose.msra.mxu0 0.0
    %1832 = vmatprep.subr.mxu0 0.0
    %1833 = vmatpush1.xpose.msra.mxu0 0.0
    %1834 = vmatprep.subr.mxu0 0.0
    %1835 = vmatpush1.xpose.msra.mxu0 0.0
    %1836 = vmatprep.subr.mxu0 0.0
    %1837 = vmatpush1.xpose.msra.mxu0 0.0
    %1838 = vmatprep.subr.mxu0 0.0
    %1839 = vmatpush1.xpose.msra.mxu0 0.0
    %1840 = vmatprep.subr.mxu0 0.0
    %1841 = vmatpush1.xpose.msra.mxu0 0.0
    %1842 = vmatprep.subr.mxu0 0.0
    %1843 = vmatpush1.xpose.msra.mxu0 0.0
    %1844 = vmatprep.subr.mxu0 0.0
    %1845 = vmatpush1.xpose.msra.mxu0 0.0
    %1846 = vmatprep.subr.mxu0 0.0
    %1847 = vmatpush1.xpose.msra.mxu0 0.0
    %1848 = vmatprep.subr.mxu0 0.0
    %1849 = vmatpush1.xpose.msra.mxu0 0.0
    %1850 = vmatprep.subr.mxu0 0.0
    %1851 = vmatpush1.xpose.msra.mxu0 0.0
    %1852 = vmatprep.subr.mxu0 0.0
    %1853 = vmatpush1.xpose.msra.mxu0 0.0
    %1854 = vmatprep.subr.mxu0 0.0
    %1855 = vmatpush1.xpose.msra.mxu0 0.0
    %1856 = vmatprep.subr.mxu0 0.0
    %1857 = vmatpush1.xpose.msra.mxu0 0.0
    %1858 = vmatprep.subr.mxu0 0.0
    %1859 = vmatpush1.xpose.msra.mxu0 0.0
    %1860 = vmatprep.subr.mxu0 0.0
    %1861 = vmatpush1.xpose.msra.mxu0 0.0
    %1862 = vmatprep.subr.mxu0 0.0
    %1863 = vmatpush1.xpose.msra.mxu0 0.0
    %1864 = vmatprep.subr.mxu0 0.0
    %1865 = vmatpush1.xpose.msra.mxu0 0.0
    %1866 = vmatprep.mubr.f32.mxu0 0.0
    %1867 = vmatmul.mubr.f32.gmra.mrb[0].mxu0 %v1798
    %v1868 = vpop.f32.mrb[0].mxu0
    %v1869 = vadd.f32 0.0, %v1868
    %v1870 = vpop.f32.mrb[0].mxu0
    %1871 = vdwg.mxu0
    %v1872 = vrcp.pop %v1801
    %v1873 = vmul.f32 %v1869, %v1872
    %1875 = vrot.lane.b32.xlu0 %v1873, 80
    %v1876 = vpop.permute.xlu0 %1875
    %vm1878 = vcmask 779904
    %1879 = vst.msk [vmem:[#allocation5] sm:$0x3] %vm1878, %v1876
    %s1880 = scalar_lea.vmem [#allocation2], 96
    %v1881 = vld [vmem:[%s1880] sm:$0xff]
    %v1882 = vld [vmem:[%s1880 + $0x8] sm:$0xff]
    %1883 = vmatprep.subr.mxu0 0.0
    %1884 = vmatpush1.msra.mxu0 %v1635
    %1885 = vmatprep.subr.mxu0 0.0
    %1886 = vmatpush1.msra.mxu0 %v1640
    %1887 = vmatprep.subr.mxu0 0.0
    %1888 = vmatpush1.msra.mxu0 0.0
    %1889 = vmatprep.subr.mxu0 0.0
    %1890 = vmatpush1.msra.mxu0 0.0
    %1891 = vmatprep.subr.mxu0 0.0
    %1892 = vmatpush1.msra.mxu0 0.0
    %1893 = vmatprep.subr.mxu0 0.0
    %1894 = vmatpush1.msra.mxu0 0.0
    %1895 = vmatprep.subr.mxu0 0.0
    %1896 = vmatpush1.msra.mxu0 0.0
    %1897 = vmatprep.subr.mxu0 0.0
    %1898 = vmatpush1.msra.mxu0 0.0
    %1899 = vmatprep.subr.mxu0 0.0
    %1900 = vmatpush1.msra.mxu0 0.0
    %1901 = vmatprep.subr.mxu0 0.0
    %1902 = vmatpush1.msra.mxu0 0.0
    %1903 = vmatprep.subr.mxu0 0.0
    %1904 = vmatpush1.msra.mxu0 0.0
    %1905 = vmatprep.subr.mxu0 0.0
    %1906 = vmatpush1.msra.mxu0 0.0
    %1907 = vmatprep.subr.mxu0 0.0
    %1908 = vmatpush1.msra.mxu0 0.0
    %1909 = vmatprep.subr.mxu0 0.0
    %1910 = vmatpush1.msra.mxu0 0.0
    %1911 = vmatprep.subr.mxu0 0.0
    %1912 = vmatpush1.msra.mxu0 0.0
    %1913 = vmatprep.subr.mxu0 0.0
    %1914 = vmatpush1.msra.mxu0 0.0
    %1915 = vmatprep.subr.mxu0 0.0
    %1916 = vmatpush1.msra.mxu0 0.0
    %1917 = vmatprep.subr.mxu0 0.0
    %1918 = vmatpush1.msra.mxu0 0.0
    %1919 = vmatprep.subr.mxu0 0.0
    %1920 = vmatpush1.msra.mxu0 0.0
    %1921 = vmatprep.subr.mxu0 0.0
    %1922 = vmatpush1.msra.mxu0 0.0
    %1923 = vmatprep.subr.mxu0 0.0
    %1924 = vmatpush1.msra.mxu0 0.0
    %1925 = vmatprep.subr.mxu0 0.0
    %1926 = vmatpush1.msra.mxu0 0.0
    %1927 = vmatprep.subr.mxu0 0.0
    %1928 = vmatpush1.msra.mxu0 0.0
    %1929 = vmatprep.subr.mxu0 0.0
    %1930 = vmatpush1.msra.mxu0 0.0
    %1931 = vmatprep.subr.mxu0 0.0
    %1932 = vmatpush1.msra.mxu0 0.0
    %1933 = vmatprep.subr.mxu0 0.0
    %1934 = vmatpush1.msra.mxu0 0.0
    %1935 = vmatprep.subr.mxu0 0.0
    %1936 = vmatpush1.msra.mxu0 0.0
    %1937 = vmatprep.subr.mxu0 0.0
    %1938 = vmatpush1.msra.mxu0 0.0
    %1939 = vmatprep.subr.mxu0 0.0
    %1940 = vmatpush1.msra.mxu0 0.0
    %1941 = vmatprep.subr.mxu0 0.0
    %1942 = vmatpush1.msra.mxu0 0.0
    %1943 = vmatprep.subr.mxu0 0.0
    %1944 = vmatpush1.msra.mxu0 0.0
    %1945 = vmatprep.subr.mxu0 0.0
    %1946 = vmatpush1.msra.mxu0 0.0
    %1947 = vmatprep.mubr.f32.mxu0 0.0
    %1948 = vmatmul.mubr.f32.gmra.mrb[0].mxu0 %v303
    %v1949 = vpop.f32.mrb[0].mxu0
    %v1950 = vadd.f32 %v1881, %v1949
    %v1951 = vpop.f32.mrb[0].mxu0
    %1952 = vmatprep.mubr.f32.mxu0 0.0
    %1953 = vmatmul.mubr.f32.gmra.mrb[0].mxu0 %v306
    %v1954 = vpop.f32.mrb[0].mxu0
    %v1955 = vadd.f32 %v1882, %v1954
    %v1956 = vpop.f32.mrb[0].mxu0
    %1957 = vdwg.mxu0
    %1958 = vmatprep.subr.mxu0 0.0
    %1959 = vmatpush1.msra.mxu0 %v1950
    %1960 = vmatprep.subr.mxu0 0.0
    %1961 = vmatpush1.msra.mxu0 %v1955
    %1962 = vmatprep.subr.mxu0 0.0
    %1963 = vmatpush1.msra.mxu0 0.0
    %1964 = vmatprep.subr.mxu0 0.0
    %1965 = vmatpush1.msra.mxu0 0.0
    %1966 = vmatprep.subr.mxu0 0.0
    %1967 = vmatpush1.msra.mxu0 0.0
    %1968 = vmatprep.subr.mxu0 0.0
    %1969 = vmatpush1.msra.mxu0 0.0
    %1970 = vmatprep.subr.mxu0 0.0
    %1971 = vmatpush1.msra.mxu0 0.0
    %1972 = vmatprep.subr.mxu0 0.0
    %1973 = vmatpush1.msra.mxu0 0.0
    %1974 = vmatprep.subr.mxu0 0.0
    %1975 = vmatpush1.msra.mxu0 0.0
    %1976 = vmatprep.subr.mxu0 0.0
    %1977 = vmatpush1.msra.mxu0 0.0
    %1978 = vmatprep.subr.mxu0 0.0
    %1979 = vmatpush1.msra.mxu0 0.0
    %1980 = vmatprep.subr.mxu0 0.0
    %1981 = vmatpush1.msra.mxu0 0.0
    %1982 = vmatprep.subr.mxu0 0.0
    %1983 = vmatpush1.msra.mxu0 0.0
    %1984 = vmatprep.subr.mxu0 0.0
    %1985 = vmatpush1.msra.mxu0 0.0
    %1986 = vmatprep.subr.mxu0 0.0
    %1987 = vmatpush1.msra.mxu0 0.0
    %1988 = vmatprep.subr.mxu0 0.0
    %1989 = vmatpush1.msra.mxu0 0.0
    %1990 = vmatprep.subr.mxu0 0.0
    %1991 = vmatpush1.msra.mxu0 0.0
    %1992 = vmatprep.subr.mxu0 0.0
    %1993 = vmatpush1.msra.mxu0 0.0
    %1994 = vmatprep.subr.mxu0 0.0
    %1995 = vmatpush1.msra.mxu0 0.0
    %1996 = vmatprep.subr.mxu0 0.0
    %1997 = vmatpush1.msra.mxu0 0.0
    %1998 = vmatprep.subr.mxu0 0.0
    %1999 = vmatpush1.msra.mxu0 0.0
    %2000 = vmatprep.subr.mxu0 0.0
    %2001 = vmatpush1.msra.mxu0 0.0
    %2002 = vmatprep.subr.mxu0 0.0
    %2003 = vmatpush1.msra.mxu0 0.0
    %2004 = vmatprep.subr.mxu0 0.0
    %2005 = vmatpush1.msra.mxu0 0.0
    %2006 = vmatprep.subr.mxu0 0.0
    %2007 = vmatpush1.msra.mxu0 0.0
    %2008 = vmatprep.subr.mxu0 0.0
    %2009 = vmatpush1.msra.mxu0 0.0
    %2010 = vmatprep.subr.mxu0 0.0
    %2011 = vmatpush1.msra.mxu0 0.0
    %2012 = vmatprep.subr.mxu0 0.0
    %2013 = vmatpush1.msra.mxu0 0.0
    %2014 = vmatprep.subr.mxu0 0.0
    %2015 = vmatpush1.msra.mxu0 0.0
    %2016 = vmatprep.subr.mxu0 0.0
    %2017 = vmatpush1.msra.mxu0 0.0
    %2018 = vmatprep.subr.mxu0 0.0
    %2019 = vmatpush1.msra.mxu0 0.0
    %2020 = vmatprep.subr.mxu0 0.0
    %2021 = vmatpush1.msra.mxu0 0.0
    %2022 = vmatprep.mubr.f32.mxu0 0.0
    %2023 = vmatmul.mubr.f32.gmra.mrb[0].mxu0 %v61
    %v2024 = vpop.f32.mrb[0].mxu0
    %v2025 = vadd.f32 0.0, %v2024
    %v2026 = vpop.f32.mrb[0].mxu0
    %2027 = vdwg.mxu0
    %s2028 = scalar_lea.vmem %s0, 48
    %v2029 = vld [vmem:[%s2028] sm:$0xff]
    %2031 = vset.pattern.permute.xlu0 0
    %2032 = vperm.xlu0 %2031, %v2029
    %v2033 = vpop.permute.xlu0 %2032
    %v2035 = vsub.f32 %v2025, %v2033
    %v2036 = vmul.f32 %v2035, %v2035
    %2037 = vmatprep.subr.mxu0 0.0
    %2038 = vmatpush1.msra.mxu0 %v2036
    %2039 = vmatprep.subr.mxu0 0.0
    %2040 = vmatpush1.msra.mxu0 0.0
    %2041 = vmatprep.subr.mxu0 0.0
    %2042 = vmatpush1.msra.mxu0 0.0
    %2043 = vmatprep.subr.mxu0 0.0
    %2044 = vmatpush1.msra.mxu0 0.0
    %2045 = vmatprep.subr.mxu0 0.0
    %2046 = vmatpush1.msra.mxu0 0.0
    %2047 = vmatprep.subr.mxu0 0.0
    %2048 = vmatpush1.msra.mxu0 0.0
    %2049 = vmatprep.subr.mxu0 0.0
    %2050 = vmatpush1.msra.mxu0 0.0
    %2051 = vmatprep.subr.mxu0 0.0
    %2052 = vmatpush1.msra.mxu0 0.0
    %2053 = vmatprep.subr.mxu0 0.0
    %2054 = vmatpush1.msra.mxu0 0.0
    %2055 = vmatprep.subr.mxu0 0.0
    %2056 = vmatpush1.msra.mxu0 0.0
    %2057 = vmatprep.subr.mxu0 0.0
    %2058 = vmatpush1.msra.mxu0 0.0
    %2059 = vmatprep.subr.mxu0 0.0
    %2060 = vmatpush1.msra.mxu0 0.0
    %2061 = vmatprep.subr.mxu0 0.0
    %2062 = vmatpush1.msra.mxu0 0.0
    %2063 = vmatprep.subr.mxu0 0.0
    %2064 = vmatpush1.msra.mxu0 0.0
    %2065 = vmatprep.subr.mxu0 0.0
    %2066 = vmatpush1.msra.mxu0 0.0
    %2067 = vmatprep.subr.mxu0 0.0
    %2068 = vmatpush1.msra.mxu0 0.0
    %2069 = vmatprep.subr.mxu0 0.0
    %2070 = vmatpush1.msra.mxu0 0.0
    %2071 = vmatprep.subr.mxu0 0.0
    %2072 = vmatpush1.msra.mxu0 0.0
    %2073 = vmatprep.subr.mxu0 0.0
    %2074 = vmatpush1.msra.mxu0 0.0
    %2075 = vmatprep.subr.mxu0 0.0
    %2076 = vmatpush1.msra.mxu0 0.0
    %2077 = vmatprep.subr.mxu0 0.0
    %2078 = vmatpush1.msra.mxu0 0.0
    %2079 = vmatprep.subr.mxu0 0.0
    %2080 = vmatpush1.msra.mxu0 0.0
    %2081 = vmatprep.subr.mxu0 0.0
    %2082 = vmatpush1.msra.mxu0 0.0
    %2083 = vmatprep.subr.mxu0 0.0
    %2084 = vmatpush1.msra.mxu0 0.0
    %2085 = vmatprep.subr.mxu0 0.0
    %2086 = vmatpush1.msra.mxu0 0.0
    %2087 = vmatprep.subr.mxu0 0.0
    %2088 = vmatpush1.msra.mxu0 0.0
    %2089 = vmatprep.subr.mxu0 0.0
    %2090 = vmatpush1.msra.mxu0 0.0
    %2091 = vmatprep.subr.mxu0 0.0
    %2092 = vmatpush1.msra.mxu0 0.0
    %2093 = vmatprep.subr.mxu0 0.0
    %2094 = vmatpush1.msra.mxu0 0.0
    %2095 = vmatprep.subr.mxu0 0.0
    %2096 = vmatpush1.msra.mxu0 0.0
    %2097 = vmatprep.subr.mxu0 0.0
    %2098 = vmatpush1.msra.mxu0 0.0
    %2099 = vmatprep.subr.mxu0 0.0
    %2100 = vmatpush1.msra.mxu0 0.0
    %2101 = vmatprep.mubr.f32.mxu0 0.0
    %2102 = vmatmul.mubr.f32.gmra.mrb[0].mxu0 %v143
    %v2103 = vpop.f32.mrb[0].mxu0
    %v2104 = vadd.f32 0.0, %v2103
    %v2105 = vpop.f32.mrb[0].mxu0
    %2106 = vdwg.mxu0
    %v2107 = vadd.f32 %v1792, %v2104
    %v2108 = vsel %vm215, %v2107, -inf
    %2109 = vmax.xlane.f32.xlu0 %v2108
    %v2110 = vpop.xlane.xlu0 %2109
    %v2111 = vsub.f32 %v2107, %v2110
    %v2112 = vmul.f32 %v2111, 1.442695
    %v2113 = vpow.pop %v2112
    %v2114 = vsel %vm215, %v2113, 0.0
    %2115 = vadd.xlane.f32.xlu0 %v2114
    %v2116 = vpop.xlane.xlu0 %2115
    %2117 = vmatprep.subr.mxu0 0.0
    %2118 = vmatpush1.xpose.msra.mxu0 %v1950
    %2119 = vmatprep.subr.mxu0 0.0
    %2120 = vmatpush1.xpose.msra.mxu0 %v1955
    %2121 = vmatprep.subr.mxu0 0.0
    %2122 = vmatpush1.xpose.msra.mxu0 0.0
    %2123 = vmatprep.subr.mxu0 0.0
    %2124 = vmatpush1.xpose.msra.mxu0 0.0
    %2125 = vmatprep.subr.mxu0 0.0
    %2126 = vmatpush1.xpose.msra.mxu0 0.0
    %2127 = vmatprep.subr.mxu0 0.0
    %2128 = vmatpush1.xpose.msra.mxu0 0.0
    %2129 = vmatprep.subr.mxu0 0.0
    %2130 = vmatpush1.xpose.msra.mxu0 0.0
    %2131 = vmatprep.subr.mxu0 0.0
    %2132 = vmatpush1.xpose.msra.mxu0 0.0
    %2133 = vmatprep.subr.mxu0 0.0
    %2134 = vmatpush1.xpose.msra.mxu0 0.0
    %2135 = vmatprep.subr.mxu0 0.0
    %2136 = vmatpush1.xpose.msra.mxu0 0.0
    %2137 = vmatprep.subr.mxu0 0.0
    %2138 = vmatpush1.xpose.msra.mxu0 0.0
    %2139 = vmatprep.subr.mxu0 0.0
    %2140 = vmatpush1.xpose.msra.mxu0 0.0
    %2141 = vmatprep.subr.mxu0 0.0
    %2142 = vmatpush1.xpose.msra.mxu0 0.0
    %2143 = vmatprep.subr.mxu0 0.0
    %2144 = vmatpush1.xpose.msra.mxu0 0.0
    %2145 = vmatprep.subr.mxu0 0.0
    %2146 = vmatpush1.xpose.msra.mxu0 0.0
    %2147 = vmatprep.subr.mxu0 0.0
    %2148 = vmatpush1.xpose.msra.mxu0 0.0
    %2149 = vmatprep.subr.mxu0 0.0
    %2150 = vmatpush1.xpose.msra.mxu0 0.0
    %2151 = vmatprep.subr.mxu0 0.0
    %2152 = vmatpush1.xpose.msra.mxu0 0.0
    %2153 = vmatprep.subr.mxu0 0.0
    %2154 = vmatpush1.xpose.msra.mxu0 0.0
    %2155 = vmatprep.subr.mxu0 0.0
    %2156 = vmatpush1.xpose.msra.mxu0 0.0
    %2157 = vmatprep.subr.mxu0 0.0
    %2158 = vmatpush1.xpose.msra.mxu0 0.0
    %2159 = vmatprep.subr.mxu0 0.0
    %2160 = vmatpush1.xpose.msra.mxu0 0.0
    %2161 = vmatprep.subr.mxu0 0.0
    %2162 = vmatpush1.xpose.msra.mxu0 0.0
    %2163 = vmatprep.subr.mxu0 0.0
    %2164 = vmatpush1.xpose.msra.mxu0 0.0
    %2165 = vmatprep.subr.mxu0 0.0
    %2166 = vmatpush1.xpose.msra.mxu0 0.0
    %2167 = vmatprep.subr.mxu0 0.0
    %2168 = vmatpush1.xpose.msra.mxu0 0.0
    %2169 = vmatprep.subr.mxu0 0.0
    %2170 = vmatpush1.xpose.msra.mxu0 0.0
    %2171 = vmatprep.subr.mxu0 0.0
    %2172 = vmatpush1.xpose.msra.mxu0 0.0
    %2173 = vmatprep.subr.mxu0 0.0
    %2174 = vmatpush1.xpose.msra.mxu0 0.0
    %2175 = vmatprep.subr.mxu0 0.0
    %2176 = vmatpush1.xpose.msra.mxu0 0.0
    %2177 = vmatprep.subr.mxu0 0.0
    %2178 = vmatpush1.xpose.msra.mxu0 0.0
    %2179 = vmatprep.subr.mxu0 0.0
    %2180 = vmatpush1.xpose.msra.mxu0 0.0
    %2181 = vmatprep.mubr.f32.mxu0 0.0
    %2182 = vmatmul.mubr.f32.gmra.mrb[0].mxu0 %v2113
    %v2183 = vpop.f32.mrb[0].mxu0
    %v2184 = vadd.f32 0.0, %v2183
    %v2185 = vpop.f32.mrb[0].mxu0
    %2186 = vdwg.mxu0
    %v2187 = vrcp.pop %v2116
    %v2188 = vmul.f32 %v2184, %v2187
    %2190 = vrot.lane.b32.xlu0 %v2188, 96
    %v2191 = vpop.permute.xlu0 %2190
    %vm2193 = vcmask 911104
    %2194 = vst.msk [vmem:[#allocation5] sm:$0x3] %vm2193, %v2191
    %s2195 = scalar_lea.vmem [#allocation2], 112
    %v2196 = vld [vmem:[%s2195] sm:$0xff]
    %v2197 = vld [vmem:[%s2195 + $0x8] sm:$0xff]
    %2198 = vmatprep.subr.mxu0 0.0
    %2199 = vmatpush1.msra.mxu0 %v1950
    %2200 = vmatprep.subr.mxu0 0.0
    %2201 = vmatpush1.msra.mxu0 %v1955
    %2202 = vmatprep.subr.mxu0 0.0
    %2203 = vmatpush1.msra.mxu0 0.0
    %2204 = vmatprep.subr.mxu0 0.0
    %2205 = vmatpush1.msra.mxu0 0.0
    %2206 = vmatprep.subr.mxu0 0.0
    %2207 = vmatpush1.msra.mxu0 0.0
    %2208 = vmatprep.subr.mxu0 0.0
    %2209 = vmatpush1.msra.mxu0 0.0
    %2210 = vmatprep.subr.mxu0 0.0
    %2211 = vmatpush1.msra.mxu0 0.0
    %2212 = vmatprep.subr.mxu0 0.0
    %2213 = vmatpush1.msra.mxu0 0.0
    %2214 = vmatprep.subr.mxu0 0.0
    %2215 = vmatpush1.msra.mxu0 0.0
    %2216 = vmatprep.subr.mxu0 0.0
    %2217 = vmatpush1.msra.mxu0 0.0
    %2218 = vmatprep.subr.mxu0 0.0
    %2219 = vmatpush1.msra.mxu0 0.0
    %2220 = vmatprep.subr.mxu0 0.0
    %2221 = vmatpush1.msra.mxu0 0.0
    %2222 = vmatprep.subr.mxu0 0.0
    %2223 = vmatpush1.msra.mxu0 0.0
    %2224 = vmatprep.subr.mxu0 0.0
    %2225 = vmatpush1.msra.mxu0 0.0
    %2226 = vmatprep.subr.mxu0 0.0
    %2227 = vmatpush1.msra.mxu0 0.0
    %2228 = vmatprep.subr.mxu0 0.0
    %2229 = vmatpush1.msra.mxu0 0.0
    %2230 = vmatprep.subr.mxu0 0.0
    %2231 = vmatpush1.msra.mxu0 0.0
    %2232 = vmatprep.subr.mxu0 0.0
    %2233 = vmatpush1.msra.mxu0 0.0
    %2234 = vmatprep.subr.mxu0 0.0
    %2235 = vmatpush1.msra.mxu0 0.0
    %2236 = vmatprep.subr.mxu0 0.0
    %2237 = vmatpush1.msra.mxu0 0.0
    %2238 = vmatprep.subr.mxu0 0.0
    %2239 = vmatpush1.msra.mxu0 0.0
    %2240 = vmatprep.subr.mxu0 0.0
    %2241 = vmatpush1.msra.mxu0 0.0
    %2242 = vmatprep.subr.mxu0 0.0
    %2243 = vmatpush1.msra.mxu0 0.0
    %2244 = vmatprep.subr.mxu0 0.0
    %2245 = vmatpush1.msra.mxu0 0.0
    %2246 = vmatprep.subr.mxu0 0.0
    %2247 = vmatpush1.msra.mxu0 0.0
    %2248 = vmatprep.subr.mxu0 0.0
    %2249 = vmatpush1.msra.mxu0 0.0
    %2250 = vmatprep.subr.mxu0 0.0
    %2251 = vmatpush1.msra.mxu0 0.0
    %2252 = vmatprep.subr.mxu0 0.0
    %2253 = vmatpush1.msra.mxu0 0.0
    %2254 = vmatprep.subr.mxu0 0.0
    %2255 = vmatpush1.msra.mxu0 0.0
    %2256 = vmatprep.subr.mxu0 0.0
    %2257 = vmatpush1.msra.mxu0 0.0
    %2258 = vmatprep.subr.mxu0 0.0
    %2259 = vmatpush1.msra.mxu0 0.0
    %2260 = vmatprep.subr.mxu0 0.0
    %2261 = vmatpush1.msra.mxu0 0.0
    %2262 = vmatprep.mubr.f32.mxu0 0.0
    %2263 = vmatmul.mubr.f32.gmra.mrb[0].mxu0 %v303
    %v2264 = vpop.f32.mrb[0].mxu0
    %v2265 = vadd.f32 %v2196, %v2264
    %v2266 = vpop.f32.mrb[0].mxu0
    %2267 = vmatprep.mubr.f32.mxu0 0.0
    %2268 = vmatmul.mubr.f32.gmra.mrb[0].mxu0 %v306
    %v2269 = vpop.f32.mrb[0].mxu0
    %v2270 = vadd.f32 %v2197, %v2269
    %v2271 = vpop.f32.mrb[0].mxu0
    %2272 = vdwg.mxu0
    %2273 = vmatprep.subr.mxu0 0.0
    %2274 = vmatpush1.msra.mxu0 %v2265
    %2275 = vmatprep.subr.mxu0 0.0
    %2276 = vmatpush1.msra.mxu0 %v2270
    %2277 = vmatprep.subr.mxu0 0.0
    %2278 = vmatpush1.msra.mxu0 0.0
    %2279 = vmatprep.subr.mxu0 0.0
    %2280 = vmatpush1.msra.mxu0 0.0
    %2281 = vmatprep.subr.mxu0 0.0
    %2282 = vmatpush1.msra.mxu0 0.0
    %2283 = vmatprep.subr.mxu0 0.0
    %2284 = vmatpush1.msra.mxu0 0.0
    %2285 = vmatprep.subr.mxu0 0.0
    %2286 = vmatpush1.msra.mxu0 0.0
    %2287 = vmatprep.subr.mxu0 0.0
    %2288 = vmatpush1.msra.mxu0 0.0
    %2289 = vmatprep.subr.mxu0 0.0
    %2290 = vmatpush1.msra.mxu0 0.0
    %2291 = vmatprep.subr.mxu0 0.0
    %2292 = vmatpush1.msra.mxu0 0.0
    %2293 = vmatprep.subr.mxu0 0.0
    %2294 = vmatpush1.msra.mxu0 0.0
    %2295 = vmatprep.subr.mxu0 0.0
    %2296 = vmatpush1.msra.mxu0 0.0
    %2297 = vmatprep.subr.mxu0 0.0
    %2298 = vmatpush1.msra.mxu0 0.0
    %2299 = vmatprep.subr.mxu0 0.0
    %2300 = vmatpush1.msra.mxu0 0.0
    %2301 = vmatprep.subr.mxu0 0.0
    %2302 = vmatpush1.msra.mxu0 0.0
    %2303 = vmatprep.subr.mxu0 0.0
    %2304 = vmatpush1.msra.mxu0 0.0
    %2305 = vmatprep.subr.mxu0 0.0
    %2306 = vmatpush1.msra.mxu0 0.0
    %2307 = vmatprep.subr.mxu0 0.0
    %2308 = vmatpush1.msra.mxu0 0.0
    %2309 = vmatprep.subr.mxu0 0.0
    %2310 = vmatpush1.msra.mxu0 0.0
    %2311 = vmatprep.subr.mxu0 0.0
    %2312 = vmatpush1.msra.mxu0 0.0
    %2313 = vmatprep.subr.mxu0 0.0
    %2314 = vmatpush1.msra.mxu0 0.0
    %2315 = vmatprep.subr.mxu0 0.0
    %2316 = vmatpush1.msra.mxu0 0.0
    %2317 = vmatprep.subr.mxu0 0.0
    %2318 = vmatpush1.msra.mxu0 0.0
    %2319 = vmatprep.subr.mxu0 0.0
    %2320 = vmatpush1.msra.mxu0 0.0
    %2321 = vmatprep.subr.mxu0 0.0
    %2322 = vmatpush1.msra.mxu0 0.0
    %2323 = vmatprep.subr.mxu0 0.0
    %2324 = vmatpush1.msra.mxu0 0.0
    %2325 = vmatprep.subr.mxu0 0.0
    %2326 = vmatpush1.msra.mxu0 0.0
    %2327 = vmatprep.subr.mxu0 0.0
    %2328 = vmatpush1.msra.mxu0 0.0
    %2329 = vmatprep.subr.mxu0 0.0
    %2330 = vmatpush1.msra.mxu0 0.0
    %2331 = vmatprep.subr.mxu0 0.0
    %2332 = vmatpush1.msra.mxu0 0.0
    %2333 = vmatprep.subr.mxu0 0.0
    %2334 = vmatpush1.msra.mxu0 0.0
    %2335 = vmatprep.subr.mxu0 0.0
    %2336 = vmatpush1.msra.mxu0 0.0
    %2337 = vmatprep.mubr.f32.mxu0 0.0
    %2338 = vmatmul.mubr.f32.gmra.mrb[0].mxu0 %v61
    %v2339 = vpop.f32.mrb[0].mxu0
    %v2340 = vadd.f32 0.0, %v2339
    %v2341 = vpop.f32.mrb[0].mxu0
    %2342 = vdwg.mxu0
    %s2343 = scalar_lea.vmem %s0, 56
    %v2344 = vld [vmem:[%s2343] sm:$0xff]
    %2346 = vset.pattern.permute.xlu0 0
    %2347 = vperm.xlu0 %2346, %v2344
    %v2348 = vpop.permute.xlu0 %2347
    %v2350 = vsub.f32 %v2340, %v2348
    %v2351 = vmul.f32 %v2350, %v2350
    %2352 = vmatprep.subr.mxu0 0.0
    %2353 = vmatpush1.msra.mxu0 %v2351
    %2354 = vmatprep.subr.mxu0 0.0
    %2355 = vmatpush1.msra.mxu0 0.0
    %2356 = vmatprep.subr.mxu0 0.0
    %2357 = vmatpush1.msra.mxu0 0.0
    %2358 = vmatprep.subr.mxu0 0.0
    %2359 = vmatpush1.msra.mxu0 0.0
    %2360 = vmatprep.subr.mxu0 0.0
    %2361 = vmatpush1.msra.mxu0 0.0
    %2362 = vmatprep.subr.mxu0 0.0
    %2363 = vmatpush1.msra.mxu0 0.0
    %2364 = vmatprep.subr.mxu0 0.0
    %2365 = vmatpush1.msra.mxu0 0.0
    %2366 = vmatprep.subr.mxu0 0.0
    %2367 = vmatpush1.msra.mxu0 0.0
    %2368 = vmatprep.subr.mxu0 0.0
    %2369 = vmatpush1.msra.mxu0 0.0
    %2370 = vmatprep.subr.mxu0 0.0
    %2371 = vmatpush1.msra.mxu0 0.0
    %2372 = vmatprep.subr.mxu0 0.0
    %2373 = vmatpush1.msra.mxu0 0.0
    %2374 = vmatprep.subr.mxu0 0.0
    %2375 = vmatpush1.msra.mxu0 0.0
    %2376 = vmatprep.subr.mxu0 0.0
    %2377 = vmatpush1.msra.mxu0 0.0
    %2378 = vmatprep.subr.mxu0 0.0
    %2379 = vmatpush1.msra.mxu0 0.0
    %2380 = vmatprep.subr.mxu0 0.0
    %2381 = vmatpush1.msra.mxu0 0.0
    %2382 = vmatprep.subr.mxu0 0.0
    %2383 = vmatpush1.msra.mxu0 0.0
    %2384 = vmatprep.subr.mxu0 0.0
    %2385 = vmatpush1.msra.mxu0 0.0
    %2386 = vmatprep.subr.mxu0 0.0
    %2387 = vmatpush1.msra.mxu0 0.0
    %2388 = vmatprep.subr.mxu0 0.0
    %2389 = vmatpush1.msra.mxu0 0.0
    %2390 = vmatprep.subr.mxu0 0.0
    %2391 = vmatpush1.msra.mxu0 0.0
    %2392 = vmatprep.subr.mxu0 0.0
    %2393 = vmatpush1.msra.mxu0 0.0
    %2394 = vmatprep.subr.mxu0 0.0
    %2395 = vmatpush1.msra.mxu0 0.0
    %2396 = vmatprep.subr.mxu0 0.0
    %2397 = vmatpush1.msra.mxu0 0.0
    %2398 = vmatprep.subr.mxu0 0.0
    %2399 = vmatpush1.msra.mxu0 0.0
    %2400 = vmatprep.subr.mxu0 0.0
    %2401 = vmatpush1.msra.mxu0 0.0
    %2402 = vmatprep.subr.mxu0 0.0
    %2403 = vmatpush1.msra.mxu0 0.0
    %2404 = vmatprep.subr.mxu0 0.0
    %2405 = vmatpush1.msra.mxu0 0.0
    %2406 = vmatprep.subr.mxu0 0.0
    %2407 = vmatpush1.msra.mxu0 0.0
    %2408 = vmatprep.subr.mxu0 0.0
    %2409 = vmatpush1.msra.mxu0 0.0
    %2410 = vmatprep.subr.mxu0 0.0
    %2411 = vmatpush1.msra.mxu0 0.0
    %2412 = vmatprep.subr.mxu0 0.0
    %2413 = vmatpush1.msra.mxu0 0.0
    %2414 = vmatprep.subr.mxu0 0.0
    %2415 = vmatpush1.msra.mxu0 0.0
    %2416 = vmatprep.mubr.f32.mxu0 0.0
    %2417 = vmatmul.mubr.f32.gmra.mrb[0].mxu0 %v143
    %v2418 = vpop.f32.mrb[0].mxu0
    %v2419 = vadd.f32 0.0, %v2418
    %v2420 = vpop.f32.mrb[0].mxu0
    %2421 = vdwg.mxu0
    %v2422 = vadd.f32 %v2107, %v2419
    %v2423 = vsel %vm215, %v2422, -inf
    %2424 = vmax.xlane.f32.xlu0 %v2423
    %v2425 = vpop.xlane.xlu0 %2424
    %v2426 = vsub.f32 %v2422, %v2425
    %v2427 = vmul.f32 %v2426, 1.442695
    %v2428 = vpow.pop %v2427
    %v2429 = vsel %vm215, %v2428, 0.0
    %2430 = vadd.xlane.f32.xlu0 %v2429
    %v2431 = vpop.xlane.xlu0 %2430
    %2432 = vmatprep.subr.mxu0 0.0
    %2433 = vmatpush1.xpose.msra.mxu0 %v2265
    %2434 = vmatprep.subr.mxu0 0.0
    %2435 = vmatpush1.xpose.msra.mxu0 %v2270
    %2436 = vmatprep.subr.mxu0 0.0
    %2437 = vmatpush1.xpose.msra.mxu0 0.0
    %2438 = vmatprep.subr.mxu0 0.0
    %2439 = vmatpush1.xpose.msra.mxu0 0.0
    %2440 = vmatprep.subr.mxu0 0.0
    %2441 = vmatpush1.xpose.msra.mxu0 0.0
    %2442 = vmatprep.subr.mxu0 0.0
    %2443 = vmatpush1.xpose.msra.mxu0 0.0
    %2444 = vmatprep.subr.mxu0 0.0
    %2445 = vmatpush1.xpose.msra.mxu0 0.0
    %2446 = vmatprep.subr.mxu0 0.0
    %2447 = vmatpush1.xpose.msra.mxu0 0.0
    %2448 = vmatprep.subr.mxu0 0.0
    %2449 = vmatpush1.xpose.msra.mxu0 0.0
    %2450 = vmatprep.subr.mxu0 0.0
    %2451 = vmatpush1.xpose.msra.mxu0 0.0
    %2452 = vmatprep.subr.mxu0 0.0
    %2453 = vmatpush1.xpose.msra.mxu0 0.0
    %2454 = vmatprep.subr.mxu0 0.0
    %2455 = vmatpush1.xpose.msra.mxu0 0.0
    %2456 = vmatprep.subr.mxu0 0.0
    %2457 = vmatpush1.xpose.msra.mxu0 0.0
    %2458 = vmatprep.subr.mxu0 0.0
    %2459 = vmatpush1.xpose.msra.mxu0 0.0
    %2460 = vmatprep.subr.mxu0 0.0
    %2461 = vmatpush1.xpose.msra.mxu0 0.0
    %2462 = vmatprep.subr.mxu0 0.0
    %2463 = vmatpush1.xpose.msra.mxu0 0.0
    %2464 = vmatprep.subr.mxu0 0.0
    %2465 = vmatpush1.xpose.msra.mxu0 0.0
    %2466 = vmatprep.subr.mxu0 0.0
    %2467 = vmatpush1.xpose.msra.mxu0 0.0
    %2468 = vmatprep.subr.mxu0 0.0
    %2469 = vmatpush1.xpose.msra.mxu0 0.0
    %2470 = vmatprep.subr.mxu0 0.0
    %2471 = vmatpush1.xpose.msra.mxu0 0.0
    %2472 = vmatprep.subr.mxu0 0.0
    %2473 = vmatpush1.xpose.msra.mxu0 0.0
    %2474 = vmatprep.subr.mxu0 0.0
    %2475 = vmatpush1.xpose.msra.mxu0 0.0
    %2476 = vmatprep.subr.mxu0 0.0
    %2477 = vmatpush1.xpose.msra.mxu0 0.0
    %2478 = vmatprep.subr.mxu0 0.0
    %2479 = vmatpush1.xpose.msra.mxu0 0.0
    %2480 = vmatprep.subr.mxu0 0.0
    %2481 = vmatpush1.xpose.msra.mxu0 0.0
    %2482 = vmatprep.subr.mxu0 0.0
    %2483 = vmatpush1.xpose.msra.mxu0 0.0
    %2484 = vmatprep.subr.mxu0 0.0
    %2485 = vmatpush1.xpose.msra.mxu0 0.0
    %2486 = vmatprep.subr.mxu0 0.0
    %2487 = vmatpush1.xpose.msra.mxu0 0.0
    %2488 = vmatprep.subr.mxu0 0.0
    %2489 = vmatpush1.xpose.msra.mxu0 0.0
    %2490 = vmatprep.subr.mxu0 0.0
    %2491 = vmatpush1.xpose.msra.mxu0 0.0
    %2492 = vmatprep.subr.mxu0 0.0
    %2493 = vmatpush1.xpose.msra.mxu0 0.0
    %2494 = vmatprep.subr.mxu0 0.0
    %2495 = vmatpush1.xpose.msra.mxu0 0.0
    %2496 = vmatprep.mubr.f32.mxu0 0.0
    %2497 = vmatmul.mubr.f32.gmra.mrb[0].mxu0 %v2428
    %v2498 = vpop.f32.mrb[0].mxu0
    %v2499 = vadd.f32 0.0, %v2498
    %v2500 = vpop.f32.mrb[0].mxu0
    %2501 = vdwg.mxu0
    %v2502 = vrcp.pop %v2431
    %v2503 = vmul.f32 %v2499, %v2502
    %2505 = vrot.lane.b32.xlu0 %v2503, 112
    %v2506 = vpop.permute.xlu0 %2505
    %vm2508 = vcmask 1042304
    %2509 = vst.msk [vmem:[#allocation5] sm:$0x3] %vm2508, %v2506
    // Predicated region
    $region30: #{tpu_custom_call.1} parent=1 // pred_check
      _
    $region31: #{tpu_custom_call.1} parent=1 // pred_check_branch
      %2511 = sbr.rel (0) target = $region33
    $region32: #{tpu_custom_call.1} parent=1 // pred_region
      %s2513 = ssub.s32 32, 32
      %2514 = vsyncadd [#allocation4], %s2513
      %s2516 = sshll.u32 [#allocation5], 4
      %s2517 = int_to_ptr.vmem [resolvable:$true] %s2516
      %2519 = dma.vmem_to_hbm [thread:$0]  %s2517, 32, %s6, [#allocation4]
    $region33: #{tpu_custom_call.1} parent=1 // pred_fallthru
      _
    // Predicated region
    $region34: #{tpu_custom_call.1} parent=1 // pred_check
      _
    $region35: #{tpu_custom_call.1} parent=1 // pred_check_branch
      %2521 = sbr.rel (0) target = $region37
    $region36: #{tpu_custom_call.1} parent=1 // pred_region
      %2522 = dma.done [#allocation4], 32
    $region37: #{tpu_custom_call.1} parent=1 // pred_fallthru
      _
    %2523 = vsyncpa [#allocation3], 1
    %2524 = vsyncpa [#allocation4], 1

</llo_original>
